<compile_context>
chip_gen: v7x
topology: tpu7x:2x2x1
jax: 0.10.0
libtpu: 0.0.40
codegen_flags: <defaults>
</compile_context>

<pallas_src>
import jax
import jax.numpy as jnp
from jax import lax
from jax.experimental import pallas as pl
from jax.experimental.pallas import tpu as pltpu

B, C_IN, D, H, W = 2, 4, 8, 8, 8       # small cube batch
C_MID = 8                               # conv output channels
K = 3                                   # conv kernel, padding 1 (SAME)
DHW = D * H * W                         # voxels per cube
N_VOX = B * DHW                         # total voxel rows (multiple of 8)
K_RAW = K * K * K * C_IN                # im2col contraction size = 108
K_PAD = 128                             # contraction dim padded to lane width
C_PAD = 128                             # output-channel dim padded to lane width


def octnet_kernel(slab_ref, wconv_ref, bconv_ref, wlin_ref, blin_ref, out_ref):
    # slab_ref:  [N_VOX, K_PAD]  bf16  im2col patches (cols >= 108 are zero)
    # wconv_ref: [K_PAD, C_PAD]  bf16  conv taps (pad rows/cols are zero)
    # bconv_ref: [1, C_PAD]      f32   conv bias (pad cols zero)
    # wlin_ref:  [C_PAD, 1]      f32   linear head, pre-scaled by 1/DHW
    # blin_ref:  [1, 1]          f32   SMEM scalar
    # out_ref:   [B, 1]          f32

    # 3x3x3 conv == one lane-dense bf16 MXU matmul; f32 accumulation.
    acc = jnp.dot(slab_ref[...], wconv_ref[...],
                  preferred_element_type=jnp.float32)        # [N_VOX, C_PAD]

    # Bias + ReLU epilogue in f32 (v5e has no bf16 VPU).  Padded channels stay
    # exactly zero (zero taps + zero bias), so they contribute nothing below.
    acc = jnp.maximum(acc + bconv_ref[...], 0.0)

    # Fused global-average-pool + linear head: the MXU consumes the ReLU'd
    # accumulator directly (1/DHW already folded into wlin), leaving only a
    # narrow [N_VOX, 1] column to reduce per cube -- 128x less reduce traffic
    # than pooling the padded accumulator, and no store/re-read of acc.
    col = jnp.dot(acc, wlin_ref[...],
                  preferred_element_type=jnp.float32)        # [N_VOX, 1]

    # Per-cube sum over the voxel axis (reshape only splits the leading dim).
    pooled = jnp.sum(col.reshape(B, DHW, 1), axis=1)         # [B, 1]
    out_ref[...] = pooled + blin_ref[0, 0]


def _patch_column_perm():
    """Column ordering of conv_general_dilated_patches, probed at trace time.

    Returns perm[f] = canonical flat index (kd, kh, kw, c_in with c_in
    fastest) of the neighborhood element that patch column f contains, so the
    weight rows can be permuted to match regardless of the library's internal
    ordering convention.  The probe is a compile-time constant.
    """
    probe = jnp.arange(K_RAW, dtype=jnp.float32).reshape(1, K, K, K, C_IN)
    cols = lax.conv_general_dilated_patches(
        probe, filter_shape=(K, K, K), window_strides=(1, 1, 1),
        padding="VALID",
        dimension_numbers=("NDHWC", "DHWIO", "NDHWC"))       # [1,1,1,1,K_RAW]
    return jnp.round(cols.reshape(K_RAW)).astype(jnp.int32)


def octnet_forward(cubes_ncdhw, wconv_dhwio, bconv, wlin, blin):
    """cubes_ncdhw: [B, C_IN, D, H, W] float32 (PyTorch layout)."""
    # NCDHW -> NDHWC (channels last); cast to bf16 BEFORE patch extraction so
    # the layout plumbing moves half the bytes.
    x = jnp.transpose(cubes_ncdhw, (0, 2, 3, 4, 1)).astype(jnp.bfloat16)

    # Single fused im2col (replaces the 27-way slice + concat).
    patches = lax.conv_general_dilated_patches(
        x, filter_shape=(K, K, K), window_strides=(1, 1, 1), padding="SAME",
        dimension_numbers=("NDHWC", "DHWIO", "NDHWC"))  # [B, D, H, W, K_RAW]
    slab = patches.reshape(N_VOX, K_RAW)
    slab = jnp.pad(slab, ((0, 0), (0, K_PAD - K_RAW)))       # bf16 [N_VOX,128]

    # Conv taps [K,K,K,C_IN,C_MID] -> rows permuted to match the patch column
    # ordering -> zero-pad to [128, 128] bf16.
    perm = _patch_column_perm()
    wmat = wconv_dhwio.reshape(K_RAW, C_MID)[perm]
    wmat = jnp.pad(wmat, ((0, K_PAD - K_RAW),
                          (0, C_PAD - C_MID))).astype(jnp.bfloat16)

    bvec = jnp.pad(bconv.reshape(1, C_MID), ((0, 0), (0, C_PAD - C_MID)))

    # Fold the 1/DHW average-pool scale into the linear head (pad rows zero).
    wlin_p = jnp.pad(wlin * (1.0 / DHW), ((0, C_PAD - C_MID), (0, 0)))

    vmem = pl.BlockSpec(memory_space=pltpu.MemorySpace.VMEM)
    smem = pl.BlockSpec(memory_space=pltpu.MemorySpace.SMEM)
    out = pl.pallas_call(
        octnet_kernel,
        out_shape=jax.ShapeDtypeStruct((B, 1), jnp.float32),
        in_specs=[vmem, vmem, vmem, vmem, smem],
        out_specs=vmem,
        # Whole problem (<1 MiB) fits VMEM -> no grid.  See header NOTE for
        # the v7x parallel-grid / tile-size recipe at realistic batch sizes.
    )(slab, wmat, bvec, wlin_p, blin.reshape(1, 1).astype(jnp.float32))

    # `.squeeze()` as in the PyTorch module: [B, 1] -> [B].
    return jnp.squeeze(out)


def reference_forward(cubes_ncdhw, wconv_dhwio, bconv, wlin, blin):
    """Pure-JAX f32 reference (XLA conv) for correctness checking."""
    x = jnp.transpose(cubes_ncdhw, (0, 2, 3, 4, 1))
    y = jax.lax.conv_general_dilated(
        x, wconv_dhwio, window_strides=(1, 1, 1), padding="SAME",
        dimension_numbers=("NDHWC", "DHWIO", "NDHWC"))
    y = jnp.maximum(y + bconv, 0.0)
    pooled = y.mean(axis=(1, 2, 3))                          # [B, C_MID]
    return jnp.squeeze(pooled @ wlin + blin)


if __name__ == "__main__":
    key = jax.random.PRNGKey(0)
    k1, k2, k3, k4, k5 = jax.random.split(key, 5)
    wconv = jax.random.normal(k1, (K, K, K, C_IN, C_MID), jnp.float32) * 0.1
    bconv = jax.random.normal(k2, (C_MID,), jnp.float32) * 0.1
    wlin = jax.random.normal(k3, (C_MID, 1), jnp.float32) * 0.1
    blin = jax.random.normal(k4, (1,), jnp.float32) * 0.1
    cubes = jax.random.normal(k5, (B, C_IN, D, H, W), jnp.float32)

    fwd = jax.jit(octnet_forward)
    logits = fwd(cubes, wconv, bconv, wlin, blin)
    jax.block_until_ready(logits)

    ref = reference_forward(cubes, wconv, bconv, wlin, blin)
    assert logits.shape == (B,), logits.shape
    # Tolerance accounts for bf16 MXU inputs (accumulation stays f32).
    assert jnp.allclose(logits, ref, rtol=1e-2, atol=1e-2), (logits, ref)

    print("KERNEL_OK")
</pallas_src>

<mosaic_0001>
module attributes {stable_mosaic.version = 11 : i64} {
  func.func @octnet_kernel(%arg0: memref<1024x128xbf16, #tpu.memory_space<vmem>>, %arg1: memref<128x128xbf16, #tpu.memory_space<vmem>>, %arg2: memref<1x128xf32, #tpu.memory_space<vmem>>, %arg3: memref<128x1xf32, #tpu.memory_space<vmem>>, %arg4: memref<1x1xf32, #tpu.memory_space<smem>>, %arg5: memref<2x1xf32, #tpu.memory_space<vmem>>) attributes {dimension_semantics = [], scalar_prefetch = 0 : i64, scratch_operands = 0 : i64, tpu.core_type = #tpu.core_type<tc>} {
    %c0 = arith.constant 0 : index
    %c0_0 = arith.constant 0 : index
    %0 = vector.load %arg0[%c0, %c0_0] : memref<1024x128xbf16, #tpu.memory_space<vmem>>, vector<1024x128xbf16>
    %c0_1 = arith.constant 0 : index
    %c0_2 = arith.constant 0 : index
    %1 = vector.load %arg1[%c0_1, %c0_2] : memref<128x128xbf16, #tpu.memory_space<vmem>>, vector<128x128xbf16>
    %cst = arith.constant dense<0.000000e+00> : vector<1024x128xf32>
    %2 = tpu.matmul %0, %1, %cst {dimension_numbers = #tpu.dot_dimension_numbers<[1], [0], [0], [1], [0, 0, 1, 1], [], []>} : vector<1024x128xbf16>, vector<128x128xbf16>, vector<1024x128xf32> -> vector<1024x128xf32>
    %c0_3 = arith.constant 0 : index
    %c0_4 = arith.constant 0 : index
    %3 = vector.load %arg2[%c0_3, %c0_4] : memref<1x128xf32, #tpu.memory_space<vmem>>, vector<1x128xf32>
    %4 = vector.broadcast %3 : vector<1x128xf32> to vector<1024x128xf32>
    %5 = arith.addf %2, %4 : vector<1024x128xf32>
    %cst_5 = arith.constant 0.000000e+00 : f32
    %6 = vector.broadcast %cst_5 : f32 to vector<1024x128xf32>
    %7 = arith.maximumf %5, %6 : vector<1024x128xf32>
    %c0_6 = arith.constant 0 : index
    %c0_7 = arith.constant 0 : index
    %8 = vector.load %arg3[%c0_6, %c0_7] : memref<128x1xf32, #tpu.memory_space<vmem>>, vector<128x1xf32>
    %cst_8 = arith.constant dense<0.000000e+00> : vector<1024x1xf32>
    %9 = tpu.matmul %7, %8, %cst_8 {dimension_numbers = #tpu.dot_dimension_numbers<[1], [0], [0], [1], [0, 0, 1, 1], [], []>} : vector<1024x128xf32>, vector<128x1xf32>, vector<1024x1xf32> -> vector<1024x1xf32>
    %10 = vector.shape_cast %9 : vector<1024x1xf32> to vector<2x512x1xf32>
    %cst_9 = arith.constant dense<0.000000e+00> : vector<2x1xf32>
    %11 = vector.multi_reduction <add>, %10, %cst_9 [1] : vector<2x512x1xf32> to vector<2x1xf32>
    %c0_10 = arith.constant 0 : index
    %c0_11 = arith.constant 0 : index
    %12 = memref.load %arg4[%c0_10, %c0_11] : memref<1x1xf32, #tpu.memory_space<smem>>
    %13 = vector.broadcast %12 : f32 to vector<2x1xf32>
    %14 = arith.addf %11, %13 : vector<2x1xf32>
    %c0_12 = arith.constant 0 : index
    %c0_13 = arith.constant 0 : index
    %15 = vector.load %arg5[%c0_12, %c0_13] : memref<2x1xf32, #tpu.memory_space<vmem>>, vector<2x1xf32>
    tpu.vector_store %arg5[%c0_12, %c0_13], %14 {strides = array<i32>} : memref<2x1xf32, #tpu.memory_space<vmem>>, vector<2x1xf32>,
    return
  }
}

</mosaic_0001>

<llo_original>
// kernel: octnet_forward.1
$region0: #{octnet_forward.1}
  #allocation0 [shape = 'u32[]', space=smem, size = 0x4, offset = 0x4, fixed_abs, tag = 'smem constant byte address 0x4 - core index']
  #allocation1 [shape = 'u32[144,128]{1,0:T(1,128)}', space=vmem, size = 0x12000, scoped, tag = 'internal scratch']
  #allocation2 [shape = 'f32[1,1]{1,0:T(1,128)S(6)}', space=smem, size = 0x200, scoped, tag = 'scoped memory for octnet_forward.1']
  %s0 = inlined_call_operand.vmem [shape: bf16[1024,128], index: 0, kind: input, shape index: {}]
  %s1 = inlined_call_operand.vmem [shape: bf16[128,128], index: 1, kind: input, shape index: {}]
  %s2 = inlined_call_operand.vmem [shape: f32[1,128], index: 2, kind: input, shape index: {}]
  %s3 = inlined_call_operand.vmem [shape: f32[128,1], index: 3, kind: input, shape index: {}]
  %s4 = inlined_call_operand.<no memory space> [shape: f32[1,1], index: 4, kind: input, shape index: {}]
  %s5 = inlined_call_operand.vmem [shape: f32[2,1], index: 5, kind: output, shape index: {}]
  %s6 = sld [smem:[#allocation0]]
  $region30: #{octnet_forward.1} parent=0
    _
  %s8 = ssub.s32 1, %s6
  %s9 = scalar_select 0, %s8, %s6
  %10 = sst [smem:[#allocation2]] %s4
  // Predicated region
  $region2: #{octnet_forward.1} parent=0 // pred_check
    _
  $region3: #{octnet_forward.1} parent=0 // pred_check_branch
    %12 = sbr.rel (0) target = $region5
  $region4: #{octnet_forward.1} parent=0 // pred_region
    _
  $region5: #{octnet_forward.1} parent=0 // pred_fallthru
    _
  // Predicated region
  $region6: #{octnet_forward.1} parent=0 // pred_check
    _
  $region7: #{octnet_forward.1} parent=0 // pred_check_branch
    %14 = sbr.rel (0) target = $region9
  $region8: #{octnet_forward.1} parent=0 // pred_region
    _
  $region9: #{octnet_forward.1} parent=0 // pred_fallthru
    _
  // Predicated region
  $region10: #{octnet_forward.1} parent=0 // pred_check
    _
  $region11: #{octnet_forward.1} parent=0 // pred_check_branch
    %16 = sbr.rel (0) target = $region13
  $region12: #{octnet_forward.1} parent=0 // pred_region
    _
  $region13: #{octnet_forward.1} parent=0 // pred_fallthru
    _
  // Predicated region
  $region14: #{octnet_forward.1} parent=0 // pred_check
    _
  $region15: #{octnet_forward.1} parent=0 // pred_check_branch
    %18 = sbr.rel (0) target = $region17
  $region16: #{octnet_forward.1} parent=0 // pred_region
    _
  $region17: #{octnet_forward.1} parent=0 // pred_fallthru
    _
  // Predicated region
  $region18: #{octnet_forward.1} parent=0 // pred_check
    _
  $region19: #{octnet_forward.1} parent=0 // pred_check_branch
    %20 = sbr.rel (0) target = $region21
  $region20: #{octnet_forward.1} parent=0 // pred_region
    _
  $region21: #{octnet_forward.1} parent=0 // pred_fallthru
    _
  %v22 = vld [vmem:[%s0] sm:$0xf]
  %v23 = vld [vmem:[%s0 + $0x4] sm:$0xf]
  %v24 = vld [vmem:[%s0 + $0x8] sm:$0xf]
  %v25 = vld [vmem:[%s0 + $0xc] sm:$0xf]
  %v26 = vld [vmem:[%s0 + $0x10] sm:$0xf]
  %v27 = vld [vmem:[%s0 + $0x14] sm:$0xf]
  %v28 = vld [vmem:[%s0 + $0x18] sm:$0xf]
  %v29 = vld [vmem:[%s0 + $0x1c] sm:$0xf]
  %v30 = vld [vmem:[%s0 + $0x20] sm:$0xf]
  %v31 = vld [vmem:[%s0 + $0x24] sm:$0xf]
  %v32 = vld [vmem:[%s0 + $0x28] sm:$0xf]
  %v33 = vld [vmem:[%s0 + $0x2c] sm:$0xf]
  %v34 = vld [vmem:[%s0 + $0x30] sm:$0xf]
  %v35 = vld [vmem:[%s0 + $0x34] sm:$0xf]
  %v36 = vld [vmem:[%s0 + $0x38] sm:$0xf]
  %v37 = vld [vmem:[%s0 + $0x3c] sm:$0xf]
  %v38 = vld [vmem:[%s0 + $0x40] sm:$0xf]
  %v39 = vld [vmem:[%s0 + $0x44] sm:$0xf]
  %v40 = vld [vmem:[%s0 + $0x48] sm:$0xf]
  %v41 = vld [vmem:[%s0 + $0x4c] sm:$0xf]
  %v42 = vld [vmem:[%s0 + $0x50] sm:$0xf]
  %v43 = vld [vmem:[%s0 + $0x54] sm:$0xf]
  %v44 = vld [vmem:[%s0 + $0x58] sm:$0xf]
  %v45 = vld [vmem:[%s0 + $0x5c] sm:$0xf]
  %v46 = vld [vmem:[%s0 + $0x60] sm:$0xf]
  %v47 = vld [vmem:[%s0 + $0x64] sm:$0xf]
  %v48 = vld [vmem:[%s0 + $0x68] sm:$0xf]
  %v49 = vld [vmem:[%s0 + $0x6c] sm:$0xf]
  %v50 = vld [vmem:[%s0 + $0x70] sm:$0xf]
  %v51 = vld [vmem:[%s0 + $0x74] sm:$0xf]
  %v52 = vld [vmem:[%s0 + $0x78] sm:$0xf]
  %v53 = vld [vmem:[%s0 + $0x7c] sm:$0xf]
  %v54 = vld [vmem:[%s0 + $0x80] sm:$0xf]
  %v55 = vld [vmem:[%s0 + $0x84] sm:$0xf]
  %v56 = vld [vmem:[%s0 + $0x88] sm:$0xf]
  %v57 = vld [vmem:[%s0 + $0x8c] sm:$0xf]
  %v58 = vld [vmem:[%s0 + $0x90] sm:$0xf]
  %v59 = vld [vmem:[%s0 + $0x94] sm:$0xf]
  %v60 = vld [vmem:[%s0 + $0x98] sm:$0xf]
  %v61 = vld [vmem:[%s0 + $0x9c] sm:$0xf]
  %v62 = vld [vmem:[%s0 + $0xa0] sm:$0xf]
  %v63 = vld [vmem:[%s0 + $0xa4] sm:$0xf]
  %v64 = vld [vmem:[%s0 + $0xa8] sm:$0xf]
  %v65 = vld [vmem:[%s0 + $0xac] sm:$0xf]
  %v66 = vld [vmem:[%s0 + $0xb0] sm:$0xf]
  %v67 = vld [vmem:[%s0 + $0xb4] sm:$0xf]
  %v68 = vld [vmem:[%s0 + $0xb8] sm:$0xf]
  %v69 = vld [vmem:[%s0 + $0xbc] sm:$0xf]
  %v70 = vld [vmem:[%s0 + $0xc0] sm:$0xf]
  %v71 = vld [vmem:[%s0 + $0xc4] sm:$0xf]
  %v72 = vld [vmem:[%s0 + $0xc8] sm:$0xf]
  %v73 = vld [vmem:[%s0 + $0xcc] sm:$0xf]
  %v74 = vld [vmem:[%s0 + $0xd0] sm:$0xf]
  %v75 = vld [vmem:[%s0 + $0xd4] sm:$0xf]
  %v76 = vld [vmem:[%s0 + $0xd8] sm:$0xf]
  %v77 = vld [vmem:[%s0 + $0xdc] sm:$0xf]
  %v78 = vld [vmem:[%s0 + $0xe0] sm:$0xf]
  %v79 = vld [vmem:[%s0 + $0xe4] sm:$0xf]
  %v80 = vld [vmem:[%s0 + $0xe8] sm:$0xf]
  %v81 = vld [vmem:[%s0 + $0xec] sm:$0xf]
  %v82 = vld [vmem:[%s0 + $0xf0] sm:$0xf]
  %v83 = vld [vmem:[%s0 + $0xf4] sm:$0xf]
  %v84 = vld [vmem:[%s0 + $0xf8] sm:$0xf]
  %v85 = vld [vmem:[%s0 + $0xfc] sm:$0xf]
  %v86 = vld [vmem:[%s0 + $0x100] sm:$0xf]
  %v87 = vld [vmem:[%s0 + $0x104] sm:$0xf]
  %v88 = vld [vmem:[%s0 + $0x108] sm:$0xf]
  %v89 = vld [vmem:[%s0 + $0x10c] sm:$0xf]
  %v90 = vld [vmem:[%s0 + $0x110] sm:$0xf]
  %v91 = vld [vmem:[%s0 + $0x114] sm:$0xf]
  %v92 = vld [vmem:[%s0 + $0x118] sm:$0xf]
  %v93 = vld [vmem:[%s0 + $0x11c] sm:$0xf]
  %v94 = vld [vmem:[%s0 + $0x120] sm:$0xf]
  %v95 = vld [vmem:[%s0 + $0x124] sm:$0xf]
  %v96 = vld [vmem:[%s0 + $0x128] sm:$0xf]
  %v97 = vld [vmem:[%s0 + $0x12c] sm:$0xf]
  %v98 = vld [vmem:[%s0 + $0x130] sm:$0xf]
  %v99 = vld [vmem:[%s0 + $0x134] sm:$0xf]
  %v100 = vld [vmem:[%s0 + $0x138] sm:$0xf]
  %v101 = vld [vmem:[%s0 + $0x13c] sm:$0xf]
  %v102 = vld [vmem:[%s0 + $0x140] sm:$0xf]
  %v103 = vld [vmem:[%s0 + $0x144] sm:$0xf]
  %v104 = vld [vmem:[%s0 + $0x148] sm:$0xf]
  %v105 = vld [vmem:[%s0 + $0x14c] sm:$0xf]
  %v106 = vld [vmem:[%s0 + $0x150] sm:$0xf]
  %v107 = vld [vmem:[%s0 + $0x154] sm:$0xf]
  %v108 = vld [vmem:[%s0 + $0x158] sm:$0xf]
  %v109 = vld [vmem:[%s0 + $0x15c] sm:$0xf]
  %v110 = vld [vmem:[%s0 + $0x160] sm:$0xf]
  %v111 = vld [vmem:[%s0 + $0x164] sm:$0xf]
  %v112 = vld [vmem:[%s0 + $0x168] sm:$0xf]
  %v113 = vld [vmem:[%s0 + $0x16c] sm:$0xf]
  %v114 = vld [vmem:[%s0 + $0x170] sm:$0xf]
  %v115 = vld [vmem:[%s0 + $0x174] sm:$0xf]
  %v116 = vld [vmem:[%s0 + $0x178] sm:$0xf]
  %v117 = vld [vmem:[%s0 + $0x17c] sm:$0xf]
  %v118 = vld [vmem:[%s0 + $0x180] sm:$0xf]
  %v119 = vld [vmem:[%s0 + $0x184] sm:$0xf]
  %v120 = vld [vmem:[%s0 + $0x188] sm:$0xf]
  %v121 = vld [vmem:[%s0 + $0x18c] sm:$0xf]
  %v122 = vld [vmem:[%s0 + $0x190] sm:$0xf]
  %v123 = vld [vmem:[%s0 + $0x194] sm:$0xf]
  %v124 = vld [vmem:[%s0 + $0x198] sm:$0xf]
  %v125 = vld [vmem:[%s0 + $0x19c] sm:$0xf]
  %v126 = vld [vmem:[%s0 + $0x1a0] sm:$0xf]
  %v127 = vld [vmem:[%s0 + $0x1a4] sm:$0xf]
  %v128 = vld [vmem:[%s0 + $0x1a8] sm:$0xf]
  %v129 = vld [vmem:[%s0 + $0x1ac] sm:$0xf]
  %v130 = vld [vmem:[%s0 + $0x1b0] sm:$0xf]
  %v131 = vld [vmem:[%s0 + $0x1b4] sm:$0xf]
  %v132 = vld [vmem:[%s0 + $0x1b8] sm:$0xf]
  %v133 = vld [vmem:[%s0 + $0x1bc] sm:$0xf]
  %v134 = vld [vmem:[%s0 + $0x1c0] sm:$0xf]
  %v135 = vld [vmem:[%s0 + $0x1c4] sm:$0xf]
  %v136 = vld [vmem:[%s0 + $0x1c8] sm:$0xf]
  %v137 = vld [vmem:[%s0 + $0x1cc] sm:$0xf]
  %v138 = vld [vmem:[%s0 + $0x1d0] sm:$0xf]
  %v139 = vld [vmem:[%s0 + $0x1d4] sm:$0xf]
  %v140 = vld [vmem:[%s0 + $0x1d8] sm:$0xf]
  %v141 = vld [vmem:[%s0 + $0x1dc] sm:$0xf]
  %v142 = vld [vmem:[%s0 + $0x1e0] sm:$0xf]
  %v143 = vld [vmem:[%s0 + $0x1e4] sm:$0xf]
  %v144 = vld [vmem:[%s0 + $0x1e8] sm:$0xf]
  %v145 = vld [vmem:[%s0 + $0x1ec] sm:$0xf]
  %v146 = vld [vmem:[%s0 + $0x1f0] sm:$0xf]
  %v147 = vld [vmem:[%s0 + $0x1f4] sm:$0xf]
  %v148 = vld [vmem:[%s0 + $0x1f8] sm:$0xf]
  %v149 = vld [vmem:[%s0 + $0x1fc] sm:$0xf]
  %v150 = vld [vmem:[%s1] sm:$0xf]
  %v151 = vld [vmem:[%s1 + $0x4] sm:$0xf]
  %v152 = vld [vmem:[%s1 + $0x8] sm:$0xf]
  %v153 = vld [vmem:[%s1 + $0xc] sm:$0xf]
  %v154 = vld [vmem:[%s1 + $0x10] sm:$0xf]
  %v155 = vld [vmem:[%s1 + $0x14] sm:$0xf]
  %v156 = vld [vmem:[%s1 + $0x18] sm:$0xf]
  %v157 = vld [vmem:[%s1 + $0x1c] sm:$0xf]
  %v158 = vld [vmem:[%s1 + $0x20] sm:$0xf]
  %v159 = vld [vmem:[%s1 + $0x24] sm:$0xf]
  %v160 = vld [vmem:[%s1 + $0x28] sm:$0xf]
  %v161 = vld [vmem:[%s1 + $0x2c] sm:$0xf]
  %v162 = vld [vmem:[%s1 + $0x30] sm:$0xf]
  %v163 = vld [vmem:[%s1 + $0x34] sm:$0xf]
  %v164 = vld [vmem:[%s1 + $0x38] sm:$0xf]
  %v165 = vld [vmem:[%s1 + $0x3c] sm:$0xf]
  %v166 = vld [vmem:[%s2] sm:$0x1]
  %v168 = vlaneseq
  %v169 = vshrl.u32 %v168, 7
  %v170 = vsub.s32 0, %v169
  %v171 = vrot.slane %v166, %v170
  %v301 = vunpack.c.l.b16 %v22
  %v302 = vunpack.c.l.b16 %v23
  %v303 = vunpack.c.l.b16 %v24
  %v304 = vunpack.c.l.b16 %v25
  %v305 = vunpack.c.l.b16 %v26
  %v306 = vunpack.c.l.b16 %v27
  %v307 = vunpack.c.l.b16 %v28
  %v308 = vunpack.c.l.b16 %v29
  %v309 = vunpack.c.l.b16 %v30
  %v310 = vunpack.c.l.b16 %v31
  %v311 = vunpack.c.l.b16 %v32
  %v312 = vunpack.c.l.b16 %v33
  %v313 = vunpack.c.l.b16 %v34
  %v314 = vunpack.c.l.b16 %v35
  %v315 = vunpack.c.l.b16 %v36
  %v316 = vunpack.c.l.b16 %v37
  %v317 = vunpack.c.l.b16 %v38
  %v318 = vunpack.c.l.b16 %v39
  %v319 = vunpack.c.l.b16 %v40
  %v320 = vunpack.c.l.b16 %v41
  %v321 = vunpack.c.l.b16 %v42
  %v322 = vunpack.c.l.b16 %v43
  %v323 = vunpack.c.l.b16 %v44
  %v324 = vunpack.c.l.b16 %v45
  %v325 = vunpack.c.l.b16 %v46
  %v326 = vunpack.c.l.b16 %v47
  %v327 = vunpack.c.l.b16 %v48
  %v328 = vunpack.c.l.b16 %v49
  %v329 = vunpack.c.l.b16 %v50
  %v330 = vunpack.c.l.b16 %v51
  %v331 = vunpack.c.l.b16 %v52
  %v332 = vunpack.c.l.b16 %v53
  %v333 = vunpack.c.l.b16 %v54
  %v334 = vunpack.c.l.b16 %v55
  %v335 = vunpack.c.l.b16 %v56
  %v336 = vunpack.c.l.b16 %v57
  %v337 = vunpack.c.l.b16 %v58
  %v338 = vunpack.c.l.b16 %v59
  %v339 = vunpack.c.l.b16 %v60
  %v340 = vunpack.c.l.b16 %v61
  %v341 = vunpack.c.l.b16 %v62
  %v342 = vunpack.c.l.b16 %v63
  %v343 = vunpack.c.l.b16 %v64
  %v344 = vunpack.c.l.b16 %v65
  %v345 = vunpack.c.l.b16 %v66
  %v346 = vunpack.c.l.b16 %v67
  %v347 = vunpack.c.l.b16 %v68
  %v348 = vunpack.c.l.b16 %v69
  %v349 = vunpack.c.l.b16 %v70
  %v350 = vunpack.c.l.b16 %v71
  %v351 = vunpack.c.l.b16 %v72
  %v352 = vunpack.c.l.b16 %v73
  %v353 = vunpack.c.l.b16 %v74
  %v354 = vunpack.c.l.b16 %v75
  %v355 = vunpack.c.l.b16 %v76
  %v356 = vunpack.c.l.b16 %v77
  %v357 = vunpack.c.l.b16 %v78
  %v358 = vunpack.c.l.b16 %v79
  %v359 = vunpack.c.l.b16 %v80
  %v360 = vunpack.c.l.b16 %v81
  %v361 = vunpack.c.l.b16 %v82
  %v362 = vunpack.c.l.b16 %v83
  %v363 = vunpack.c.l.b16 %v84
  %v364 = vunpack.c.l.b16 %v85
  %v365 = vunpack.c.l.b16 %v86
  %v366 = vunpack.c.l.b16 %v87
  %v367 = vunpack.c.l.b16 %v88
  %v368 = vunpack.c.l.b16 %v89
  %v369 = vunpack.c.l.b16 %v90
  %v370 = vunpack.c.l.b16 %v91
  %v371 = vunpack.c.l.b16 %v92
  %v372 = vunpack.c.l.b16 %v93
  %v373 = vunpack.c.l.b16 %v94
  %v374 = vunpack.c.l.b16 %v95
  %v375 = vunpack.c.l.b16 %v96
  %v376 = vunpack.c.l.b16 %v97
  %v377 = vunpack.c.l.b16 %v98
  %v378 = vunpack.c.l.b16 %v99
  %v379 = vunpack.c.l.b16 %v100
  %v380 = vunpack.c.l.b16 %v101
  %v381 = vunpack.c.l.b16 %v102
  %v382 = vunpack.c.l.b16 %v103
  %v383 = vunpack.c.l.b16 %v104
  %v384 = vunpack.c.l.b16 %v105
  %v385 = vunpack.c.l.b16 %v106
  %v386 = vunpack.c.l.b16 %v107
  %v387 = vunpack.c.l.b16 %v108
  %v388 = vunpack.c.l.b16 %v109
  %v389 = vunpack.c.l.b16 %v110
  %v390 = vunpack.c.l.b16 %v111
  %v391 = vunpack.c.l.b16 %v112
  %v392 = vunpack.c.l.b16 %v113
  %v393 = vunpack.c.l.b16 %v114
  %v394 = vunpack.c.l.b16 %v115
  %v395 = vunpack.c.l.b16 %v116
  %v396 = vunpack.c.l.b16 %v117
  %v397 = vunpack.c.l.b16 %v118
  %v398 = vunpack.c.l.b16 %v119
  %v399 = vunpack.c.l.b16 %v120
  %v400 = vunpack.c.l.b16 %v121
  %v401 = vunpack.c.l.b16 %v122
  %v402 = vunpack.c.l.b16 %v123
  %v403 = vunpack.c.l.b16 %v124
  %v404 = vunpack.c.l.b16 %v125
  %v405 = vunpack.c.l.b16 %v126
  %v406 = vunpack.c.l.b16 %v127
  %v407 = vunpack.c.l.b16 %v128
  %v408 = vunpack.c.l.b16 %v129
  %v409 = vunpack.c.l.b16 %v130
  %v410 = vunpack.c.l.b16 %v131
  %v411 = vunpack.c.l.b16 %v132
  %v412 = vunpack.c.l.b16 %v133
  %v413 = vunpack.c.l.b16 %v134
  %v414 = vunpack.c.l.b16 %v135
  %v415 = vunpack.c.l.b16 %v136
  %v416 = vunpack.c.l.b16 %v137
  %v417 = vunpack.c.l.b16 %v138
  %v418 = vunpack.c.l.b16 %v139
  %v419 = vunpack.c.l.b16 %v140
  %v420 = vunpack.c.l.b16 %v141
  %v421 = vunpack.c.l.b16 %v142
  %v422 = vunpack.c.l.b16 %v143
  %v423 = vunpack.c.l.b16 %v144
  %v424 = vunpack.c.l.b16 %v145
  %v425 = vunpack.c.l.b16 %v146
  %v426 = vunpack.c.l.b16 %v147
  %v427 = vunpack.c.l.b16 %v148
  %v428 = vunpack.c.l.b16 %v149
  %v429 = vpack.c.b16 %v302, %v301
  %v430 = vpack.c.b16 %v304, %v303
  %v431 = vpack.c.b16 %v306, %v305
  %v432 = vpack.c.b16 %v308, %v307
  %v433 = vpack.c.b16 %v310, %v309
  %v434 = vpack.c.b16 %v312, %v311
  %v435 = vpack.c.b16 %v314, %v313
  %v436 = vpack.c.b16 %v316, %v315
  %v437 = vpack.c.b16 %v318, %v317
  %v438 = vpack.c.b16 %v320, %v319
  %v439 = vpack.c.b16 %v322, %v321
  %v440 = vpack.c.b16 %v324, %v323
  %v441 = vpack.c.b16 %v326, %v325
  %v442 = vpack.c.b16 %v328, %v327
  %v443 = vpack.c.b16 %v330, %v329
  %v444 = vpack.c.b16 %v332, %v331
  %v445 = vpack.c.b16 %v334, %v333
  %v446 = vpack.c.b16 %v336, %v335
  %v447 = vpack.c.b16 %v338, %v337
  %v448 = vpack.c.b16 %v340, %v339
  %v449 = vpack.c.b16 %v342, %v341
  %v450 = vpack.c.b16 %v344, %v343
  %v451 = vpack.c.b16 %v346, %v345
  %v452 = vpack.c.b16 %v348, %v347
  %v453 = vpack.c.b16 %v350, %v349
  %v454 = vpack.c.b16 %v352, %v351
  %v455 = vpack.c.b16 %v354, %v353
  %v456 = vpack.c.b16 %v356, %v355
  %v457 = vpack.c.b16 %v358, %v357
  %v458 = vpack.c.b16 %v360, %v359
  %v459 = vpack.c.b16 %v362, %v361
  %v460 = vpack.c.b16 %v364, %v363
  %v461 = vpack.c.b16 %v366, %v365
  %v462 = vpack.c.b16 %v368, %v367
  %v463 = vpack.c.b16 %v370, %v369
  %v464 = vpack.c.b16 %v372, %v371
  %v465 = vpack.c.b16 %v374, %v373
  %v466 = vpack.c.b16 %v376, %v375
  %v467 = vpack.c.b16 %v378, %v377
  %v468 = vpack.c.b16 %v380, %v379
  %v469 = vpack.c.b16 %v382, %v381
  %v470 = vpack.c.b16 %v384, %v383
  %v471 = vpack.c.b16 %v386, %v385
  %v472 = vpack.c.b16 %v388, %v387
  %v473 = vpack.c.b16 %v390, %v389
  %v474 = vpack.c.b16 %v392, %v391
  %v475 = vpack.c.b16 %v394, %v393
  %v476 = vpack.c.b16 %v396, %v395
  %v477 = vpack.c.b16 %v398, %v397
  %v478 = vpack.c.b16 %v400, %v399
  %v479 = vpack.c.b16 %v402, %v401
  %v480 = vpack.c.b16 %v404, %v403
  %v481 = vpack.c.b16 %v406, %v405
  %v482 = vpack.c.b16 %v408, %v407
  %v483 = vpack.c.b16 %v410, %v409
  %v484 = vpack.c.b16 %v412, %v411
  %v485 = vpack.c.b16 %v414, %v413
  %v486 = vpack.c.b16 %v416, %v415
  %v487 = vpack.c.b16 %v418, %v417
  %v488 = vpack.c.b16 %v420, %v419
  %v489 = vpack.c.b16 %v422, %v421
  %v490 = vpack.c.b16 %v424, %v423
  %v491 = vpack.c.b16 %v426, %v425
  %v492 = vpack.c.b16 %v428, %v427
  %v573 = vunpack.c.l.b16 %v150
  %v574 = vunpack.c.l.b16 %v151
  %v575 = vunpack.c.l.b16 %v152
  %v576 = vunpack.c.l.b16 %v153
  %v577 = vunpack.c.l.b16 %v154
  %v578 = vunpack.c.l.b16 %v155
  %v579 = vunpack.c.l.b16 %v156
  %v580 = vunpack.c.l.b16 %v157
  %v581 = vunpack.c.l.b16 %v158
  %v582 = vunpack.c.l.b16 %v159
  %v583 = vunpack.c.l.b16 %v160
  %v584 = vunpack.c.l.b16 %v161
  %v585 = vunpack.c.l.b16 %v162
  %v586 = vunpack.c.l.b16 %v163
  %v587 = vunpack.c.l.b16 %v164
  %v588 = vunpack.c.l.b16 %v165
  %v589 = vpack.c.b16 %v574, %v573
  %v590 = vpack.c.b16 %v576, %v575
  %v591 = vpack.c.b16 %v578, %v577
  %v592 = vpack.c.b16 %v580, %v579
  %v593 = vpack.c.b16 %v582, %v581
  %v594 = vpack.c.b16 %v584, %v583
  %v595 = vpack.c.b16 %v586, %v585
  %v596 = vpack.c.b16 %v588, %v587
  %605 = vmatprep.subr.bf16.mxu0 0
  %606 = vmatpush1.bf16.msra.mxu0 %v589
  %607 = vmatprep.subr.bf16.mxu0 0
  %608 = vmatpush1.bf16.msra.mxu0 %v590
  %609 = vmatprep.subr.bf16.mxu0 0
  %610 = vmatpush1.bf16.msra.mxu0 %v591
  %611 = vmatprep.subr.bf16.mxu0 0
  %612 = vmatpush1.bf16.msra.mxu0 %v592
  %613 = vmatprep.subr.bf16.mxu0 0
  %614 = vmatpush1.bf16.msra.mxu0 %v593
  %615 = vmatprep.subr.bf16.mxu0 0
  %616 = vmatpush1.bf16.msra.mxu0 %v594
  %617 = vmatprep.subr.bf16.mxu0 0
  %618 = vmatpush1.bf16.msra.mxu0 %v595
  %619 = vmatprep.subr.bf16.mxu0 0
  %620 = vmatpush1.bf16.msra.mxu0 %v596
  %621 = vmatprep.subr.bf16.mxu0 0
  %622 = vmatpush1.bf16.msra.mxu0 0
  %623 = vmatprep.subr.bf16.mxu0 0
  %624 = vmatpush1.bf16.msra.mxu0 0
  %625 = vmatprep.subr.bf16.mxu0 0
  %626 = vmatpush1.bf16.msra.mxu0 0
  %627 = vmatprep.subr.bf16.mxu0 0
  %628 = vmatpush1.bf16.msra.mxu0 0
  %629 = vmatprep.subr.bf16.mxu0 0
  %630 = vmatpush1.bf16.msra.mxu0 0
  %631 = vmatprep.subr.bf16.mxu0 0
  %632 = vmatpush1.bf16.msra.mxu0 0
  %633 = vmatprep.subr.bf16.mxu0 0
  %634 = vmatpush1.bf16.msra.mxu0 0
  %635 = vmatprep.subr.bf16.mxu0 0
  %636 = vmatpush1.bf16.msra.mxu0 0
  %637 = vmatprep.mubr.bf16.mxu0 0
  %638 = vmatmul.mubr.bf16.gmra.mrb[0].mxu0 %v429
  %v639 = vpop.f32.mrb[0].mxu0
  %v640 = vadd.f32 %v171, %v639
  %v641 = vpop.f32.mrb[0].mxu0
  %v642 = vpop.f32.mrb[0].mxu0
  %v643 = vadd.f32 %v171, %v642
  %v644 = vpop.f32.mrb[0].mxu0
  %645 = vmatprep.mubr.bf16.mxu0 0
  %646 = vmatmul.mubr.bf16.gmra.mrb[0].mxu0 %v430
  %v647 = vpop.f32.mrb[0].mxu0
  %v648 = vadd.f32 %v171, %v647
  %v649 = vpop.f32.mrb[0].mxu0
  %v650 = vpop.f32.mrb[0].mxu0
  %v651 = vadd.f32 %v171, %v650
  %v652 = vpop.f32.mrb[0].mxu0
  %653 = vmatprep.mubr.bf16.mxu0 0
  %654 = vmatmul.mubr.bf16.gmra.mrb[0].mxu0 %v431
  %v655 = vpop.f32.mrb[0].mxu0
  %v656 = vadd.f32 %v171, %v655
  %v657 = vpop.f32.mrb[0].mxu0
  %v658 = vpop.f32.mrb[0].mxu0
  %v659 = vadd.f32 %v171, %v658
  %v660 = vpop.f32.mrb[0].mxu0
  %661 = vmatprep.mubr.bf16.mxu0 0
  %662 = vmatmul.mubr.bf16.gmra.mrb[0].mxu0 %v432
  %v663 = vpop.f32.mrb[0].mxu0
  %v664 = vadd.f32 %v171, %v663
  %v665 = vpop.f32.mrb[0].mxu0
  %v666 = vpop.f32.mrb[0].mxu0
  %v667 = vadd.f32 %v171, %v666
  %v668 = vpop.f32.mrb[0].mxu0
  %669 = vmatprep.mubr.bf16.mxu0 0
  %670 = vmatmul.mubr.bf16.gmra.mrb[0].mxu0 %v433
  %v671 = vpop.f32.mrb[0].mxu0
  %v672 = vadd.f32 %v171, %v671
  %v673 = vpop.f32.mrb[0].mxu0
  %v674 = vpop.f32.mrb[0].mxu0
  %v675 = vadd.f32 %v171, %v674
  %v676 = vpop.f32.mrb[0].mxu0
  %677 = vmatprep.mubr.bf16.mxu0 0
  %678 = vmatmul.mubr.bf16.gmra.mrb[0].mxu0 %v434
  %v679 = vpop.f32.mrb[0].mxu0
  %v680 = vadd.f32 %v171, %v679
  %v681 = vpop.f32.mrb[0].mxu0
  %v682 = vpop.f32.mrb[0].mxu0
  %v683 = vadd.f32 %v171, %v682
  %v684 = vpop.f32.mrb[0].mxu0
  %685 = vmatprep.mubr.bf16.mxu0 0
  %686 = vmatmul.mubr.bf16.gmra.mrb[0].mxu0 %v435
  %v687 = vpop.f32.mrb[0].mxu0
  %v688 = vadd.f32 %v171, %v687
  %v689 = vpop.f32.mrb[0].mxu0
  %v690 = vpop.f32.mrb[0].mxu0
  %v691 = vadd.f32 %v171, %v690
  %v692 = vpop.f32.mrb[0].mxu0
  %693 = vmatprep.mubr.bf16.mxu0 0
  %694 = vmatmul.mubr.bf16.gmra.mrb[0].mxu0 %v436
  %v695 = vpop.f32.mrb[0].mxu0
  %v696 = vadd.f32 %v171, %v695
  %v697 = vpop.f32.mrb[0].mxu0
  %v698 = vpop.f32.mrb[0].mxu0
  %v699 = vadd.f32 %v171, %v698
  %v700 = vpop.f32.mrb[0].mxu0
  %701 = vmatprep.mubr.bf16.mxu0 0
  %702 = vmatmul.mubr.bf16.gmra.mrb[0].mxu0 %v437
  %v703 = vpop.f32.mrb[0].mxu0
  %v704 = vadd.f32 %v171, %v703
  %v705 = vpop.f32.mrb[0].mxu0
  %v706 = vpop.f32.mrb[0].mxu0
  %v707 = vadd.f32 %v171, %v706
  %v708 = vpop.f32.mrb[0].mxu0
  %709 = vmatprep.mubr.bf16.mxu0 0
  %710 = vmatmul.mubr.bf16.gmra.mrb[0].mxu0 %v438
  %v711 = vpop.f32.mrb[0].mxu0
  %v712 = vadd.f32 %v171, %v711
  %v713 = vpop.f32.mrb[0].mxu0
  %v714 = vpop.f32.mrb[0].mxu0
  %v715 = vadd.f32 %v171, %v714
  %v716 = vpop.f32.mrb[0].mxu0
  %717 = vmatprep.mubr.bf16.mxu0 0
  %718 = vmatmul.mubr.bf16.gmra.mrb[0].mxu0 %v439
  %v719 = vpop.f32.mrb[0].mxu0
  %v720 = vadd.f32 %v171, %v719
  %v721 = vpop.f32.mrb[0].mxu0
  %v722 = vpop.f32.mrb[0].mxu0
  %v723 = vadd.f32 %v171, %v722
  %v724 = vpop.f32.mrb[0].mxu0
  %725 = vmatprep.mubr.bf16.mxu0 0
  %726 = vmatmul.mubr.bf16.gmra.mrb[0].mxu0 %v440
  %v727 = vpop.f32.mrb[0].mxu0
  %v728 = vadd.f32 %v171, %v727
  %v729 = vpop.f32.mrb[0].mxu0
  %v730 = vpop.f32.mrb[0].mxu0
  %v731 = vadd.f32 %v171, %v730
  %v732 = vpop.f32.mrb[0].mxu0
  %733 = vmatprep.mubr.bf16.mxu0 0
  %734 = vmatmul.mubr.bf16.gmra.mrb[0].mxu0 %v441
  %v735 = vpop.f32.mrb[0].mxu0
  %v736 = vadd.f32 %v171, %v735
  %v737 = vpop.f32.mrb[0].mxu0
  %v738 = vpop.f32.mrb[0].mxu0
  %v739 = vadd.f32 %v171, %v738
  %v740 = vpop.f32.mrb[0].mxu0
  %741 = vmatprep.mubr.bf16.mxu0 0
  %742 = vmatmul.mubr.bf16.gmra.mrb[0].mxu0 %v442
  %v743 = vpop.f32.mrb[0].mxu0
  %v744 = vadd.f32 %v171, %v743
  %v745 = vpop.f32.mrb[0].mxu0
  %v746 = vpop.f32.mrb[0].mxu0
  %v747 = vadd.f32 %v171, %v746
  %v748 = vpop.f32.mrb[0].mxu0
  %749 = vmatprep.mubr.bf16.mxu0 0
  %750 = vmatmul.mubr.bf16.gmra.mrb[0].mxu0 %v443
  %v751 = vpop.f32.mrb[0].mxu0
  %v752 = vadd.f32 %v171, %v751
  %v753 = vpop.f32.mrb[0].mxu0
  %v754 = vpop.f32.mrb[0].mxu0
  %v755 = vadd.f32 %v171, %v754
  %v756 = vpop.f32.mrb[0].mxu0
  %757 = vmatprep.mubr.bf16.mxu0 0
  %758 = vmatmul.mubr.bf16.gmra.mrb[0].mxu0 %v444
  %v759 = vpop.f32.mrb[0].mxu0
  %v760 = vadd.f32 %v171, %v759
  %v761 = vpop.f32.mrb[0].mxu0
  %v762 = vpop.f32.mrb[0].mxu0
  %v763 = vadd.f32 %v171, %v762
  %v764 = vpop.f32.mrb[0].mxu0
  %765 = vmatprep.mubr.bf16.mxu0 0
  %766 = vmatmul.mubr.bf16.gmra.mrb[0].mxu0 %v445
  %v767 = vpop.f32.mrb[0].mxu0
  %v768 = vadd.f32 %v171, %v767
  %v769 = vpop.f32.mrb[0].mxu0
  %v770 = vpop.f32.mrb[0].mxu0
  %v771 = vadd.f32 %v171, %v770
  %v772 = vpop.f32.mrb[0].mxu0
  %773 = vmatprep.mubr.bf16.mxu0 0
  %774 = vmatmul.mubr.bf16.gmra.mrb[0].mxu0 %v446
  %v775 = vpop.f32.mrb[0].mxu0
  %v776 = vadd.f32 %v171, %v775
  %v777 = vpop.f32.mrb[0].mxu0
  %v778 = vpop.f32.mrb[0].mxu0
  %v779 = vadd.f32 %v171, %v778
  %v780 = vpop.f32.mrb[0].mxu0
  %781 = vmatprep.mubr.bf16.mxu0 0
  %782 = vmatmul.mubr.bf16.gmra.mrb[0].mxu0 %v447
  %v783 = vpop.f32.mrb[0].mxu0
  %v784 = vadd.f32 %v171, %v783
  %v785 = vpop.f32.mrb[0].mxu0
  %v786 = vpop.f32.mrb[0].mxu0
  %v787 = vadd.f32 %v171, %v786
  %v788 = vpop.f32.mrb[0].mxu0
  %789 = vmatprep.mubr.bf16.mxu0 0
  %790 = vmatmul.mubr.bf16.gmra.mrb[0].mxu0 %v448
  %v791 = vpop.f32.mrb[0].mxu0
  %v792 = vadd.f32 %v171, %v791
  %v793 = vpop.f32.mrb[0].mxu0
  %v794 = vpop.f32.mrb[0].mxu0
  %v795 = vadd.f32 %v171, %v794
  %v796 = vpop.f32.mrb[0].mxu0
  %797 = vmatprep.mubr.bf16.mxu0 0
  %798 = vmatmul.mubr.bf16.gmra.mrb[0].mxu0 %v449
  %v799 = vpop.f32.mrb[0].mxu0
  %v800 = vadd.f32 %v171, %v799
  %v801 = vpop.f32.mrb[0].mxu0
  %v802 = vpop.f32.mrb[0].mxu0
  %v803 = vadd.f32 %v171, %v802
  %v804 = vpop.f32.mrb[0].mxu0
  %805 = vmatprep.mubr.bf16.mxu0 0
  %806 = vmatmul.mubr.bf16.gmra.mrb[0].mxu0 %v450
  %v807 = vpop.f32.mrb[0].mxu0
  %v808 = vadd.f32 %v171, %v807
  %v809 = vpop.f32.mrb[0].mxu0
  %v810 = vpop.f32.mrb[0].mxu0
  %v811 = vadd.f32 %v171, %v810
  %v812 = vpop.f32.mrb[0].mxu0
  %813 = vmatprep.mubr.bf16.mxu0 0
  %814 = vmatmul.mubr.bf16.gmra.mrb[0].mxu0 %v451
  %v815 = vpop.f32.mrb[0].mxu0
  %v816 = vadd.f32 %v171, %v815
  %v817 = vpop.f32.mrb[0].mxu0
  %v818 = vpop.f32.mrb[0].mxu0
  %v819 = vadd.f32 %v171, %v818
  %v820 = vpop.f32.mrb[0].mxu0
  %821 = vmatprep.mubr.bf16.mxu0 0
  %822 = vmatmul.mubr.bf16.gmra.mrb[0].mxu0 %v452
  %v823 = vpop.f32.mrb[0].mxu0
  %v824 = vadd.f32 %v171, %v823
  %v825 = vpop.f32.mrb[0].mxu0
  %v826 = vpop.f32.mrb[0].mxu0
  %v827 = vadd.f32 %v171, %v826
  %v828 = vpop.f32.mrb[0].mxu0
  %829 = vmatprep.mubr.bf16.mxu0 0
  %830 = vmatmul.mubr.bf16.gmra.mrb[0].mxu0 %v453
  %v831 = vpop.f32.mrb[0].mxu0
  %v832 = vadd.f32 %v171, %v831
  %v833 = vpop.f32.mrb[0].mxu0
  %v834 = vpop.f32.mrb[0].mxu0
  %v835 = vadd.f32 %v171, %v834
  %v836 = vpop.f32.mrb[0].mxu0
  %837 = vmatprep.mubr.bf16.mxu0 0
  %838 = vmatmul.mubr.bf16.gmra.mrb[0].mxu0 %v454
  %v839 = vpop.f32.mrb[0].mxu0
  %v840 = vadd.f32 %v171, %v839
  %v841 = vpop.f32.mrb[0].mxu0
  %v842 = vpop.f32.mrb[0].mxu0
  %v843 = vadd.f32 %v171, %v842
  %v844 = vpop.f32.mrb[0].mxu0
  %845 = vmatprep.mubr.bf16.mxu0 0
  %846 = vmatmul.mubr.bf16.gmra.mrb[0].mxu0 %v455
  %v847 = vpop.f32.mrb[0].mxu0
  %v848 = vadd.f32 %v171, %v847
  %v849 = vpop.f32.mrb[0].mxu0
  %v850 = vpop.f32.mrb[0].mxu0
  %v851 = vadd.f32 %v171, %v850
  %v852 = vpop.f32.mrb[0].mxu0
  %853 = vmatprep.mubr.bf16.mxu0 0
  %854 = vmatmul.mubr.bf16.gmra.mrb[0].mxu0 %v456
  %v855 = vpop.f32.mrb[0].mxu0
  %v856 = vadd.f32 %v171, %v855
  %v857 = vpop.f32.mrb[0].mxu0
  %v858 = vpop.f32.mrb[0].mxu0
  %v859 = vadd.f32 %v171, %v858
  %v860 = vpop.f32.mrb[0].mxu0
  %861 = vmatprep.mubr.bf16.mxu0 0
  %862 = vmatmul.mubr.bf16.gmra.mrb[0].mxu0 %v457
  %v863 = vpop.f32.mrb[0].mxu0
  %v864 = vadd.f32 %v171, %v863
  %v865 = vpop.f32.mrb[0].mxu0
  %v866 = vpop.f32.mrb[0].mxu0
  %v867 = vadd.f32 %v171, %v866
  %v868 = vpop.f32.mrb[0].mxu0
  %869 = vmatprep.mubr.bf16.mxu0 0
  %870 = vmatmul.mubr.bf16.gmra.mrb[0].mxu0 %v458
  %v871 = vpop.f32.mrb[0].mxu0
  %v872 = vadd.f32 %v171, %v871
  %v873 = vpop.f32.mrb[0].mxu0
  %v874 = vpop.f32.mrb[0].mxu0
  %v875 = vadd.f32 %v171, %v874
  %v876 = vpop.f32.mrb[0].mxu0
  %877 = vmatprep.mubr.bf16.mxu0 0
  %878 = vmatmul.mubr.bf16.gmra.mrb[0].mxu0 %v459
  %v879 = vpop.f32.mrb[0].mxu0
  %v880 = vadd.f32 %v171, %v879
  %v881 = vpop.f32.mrb[0].mxu0
  %v882 = vpop.f32.mrb[0].mxu0
  %v883 = vadd.f32 %v171, %v882
  %v884 = vpop.f32.mrb[0].mxu0
  %885 = vmatprep.mubr.bf16.mxu0 0
  %886 = vmatmul.mubr.bf16.gmra.mrb[0].mxu0 %v460
  %v887 = vpop.f32.mrb[0].mxu0
  %v888 = vadd.f32 %v171, %v887
  %v889 = vpop.f32.mrb[0].mxu0
  %v890 = vpop.f32.mrb[0].mxu0
  %v891 = vadd.f32 %v171, %v890
  %v892 = vpop.f32.mrb[0].mxu0
  %893 = vmatprep.mubr.bf16.mxu0 0
  %894 = vmatmul.mubr.bf16.gmra.mrb[0].mxu0 %v461
  %v895 = vpop.f32.mrb[0].mxu0
  %v896 = vadd.f32 %v171, %v895
  %v897 = vpop.f32.mrb[0].mxu0
  %v898 = vpop.f32.mrb[0].mxu0
  %v899 = vadd.f32 %v171, %v898
  %v900 = vpop.f32.mrb[0].mxu0
  %901 = vmatprep.mubr.bf16.mxu0 0
  %902 = vmatmul.mubr.bf16.gmra.mrb[0].mxu0 %v462
  %v903 = vpop.f32.mrb[0].mxu0
  %v904 = vadd.f32 %v171, %v903
  %v905 = vpop.f32.mrb[0].mxu0
  %v906 = vpop.f32.mrb[0].mxu0
  %v907 = vadd.f32 %v171, %v906
  %v908 = vpop.f32.mrb[0].mxu0
  %909 = vmatprep.mubr.bf16.mxu0 0
  %910 = vmatmul.mubr.bf16.gmra.mrb[0].mxu0 %v463
  %v911 = vpop.f32.mrb[0].mxu0
  %v912 = vadd.f32 %v171, %v911
  %v913 = vpop.f32.mrb[0].mxu0
  %v914 = vpop.f32.mrb[0].mxu0
  %v915 = vadd.f32 %v171, %v914
  %v916 = vpop.f32.mrb[0].mxu0
  %917 = vmatprep.mubr.bf16.mxu0 0
  %918 = vmatmul.mubr.bf16.gmra.mrb[0].mxu0 %v464
  %v919 = vpop.f32.mrb[0].mxu0
  %v920 = vadd.f32 %v171, %v919
  %v921 = vpop.f32.mrb[0].mxu0
  %v922 = vpop.f32.mrb[0].mxu0
  %v923 = vadd.f32 %v171, %v922
  %v924 = vpop.f32.mrb[0].mxu0
  %925 = vmatprep.mubr.bf16.mxu0 0
  %926 = vmatmul.mubr.bf16.gmra.mrb[0].mxu0 %v465
  %v927 = vpop.f32.mrb[0].mxu0
  %v928 = vadd.f32 %v171, %v927
  %v929 = vpop.f32.mrb[0].mxu0
  %v930 = vpop.f32.mrb[0].mxu0
  %v931 = vadd.f32 %v171, %v930
  %v932 = vpop.f32.mrb[0].mxu0
  %933 = vmatprep.mubr.bf16.mxu0 0
  %934 = vmatmul.mubr.bf16.gmra.mrb[0].mxu0 %v466
  %v935 = vpop.f32.mrb[0].mxu0
  %v936 = vadd.f32 %v171, %v935
  %v937 = vpop.f32.mrb[0].mxu0
  %v938 = vpop.f32.mrb[0].mxu0
  %v939 = vadd.f32 %v171, %v938
  %v940 = vpop.f32.mrb[0].mxu0
  %941 = vmatprep.mubr.bf16.mxu0 0
  %942 = vmatmul.mubr.bf16.gmra.mrb[0].mxu0 %v467
  %v943 = vpop.f32.mrb[0].mxu0
  %v944 = vadd.f32 %v171, %v943
  %v945 = vpop.f32.mrb[0].mxu0
  %v946 = vpop.f32.mrb[0].mxu0
  %v947 = vadd.f32 %v171, %v946
  %v948 = vpop.f32.mrb[0].mxu0
  %949 = vmatprep.mubr.bf16.mxu0 0
  %950 = vmatmul.mubr.bf16.gmra.mrb[0].mxu0 %v468
  %v951 = vpop.f32.mrb[0].mxu0
  %v952 = vadd.f32 %v171, %v951
  %v953 = vpop.f32.mrb[0].mxu0
  %v954 = vpop.f32.mrb[0].mxu0
  %v955 = vadd.f32 %v171, %v954
  %v956 = vpop.f32.mrb[0].mxu0
  %957 = vmatprep.mubr.bf16.mxu0 0
  %958 = vmatmul.mubr.bf16.gmra.mrb[0].mxu0 %v469
  %v959 = vpop.f32.mrb[0].mxu0
  %v960 = vadd.f32 %v171, %v959
  %v961 = vpop.f32.mrb[0].mxu0
  %v962 = vpop.f32.mrb[0].mxu0
  %v963 = vadd.f32 %v171, %v962
  %v964 = vpop.f32.mrb[0].mxu0
  %965 = vmatprep.mubr.bf16.mxu0 0
  %966 = vmatmul.mubr.bf16.gmra.mrb[0].mxu0 %v470
  %v967 = vpop.f32.mrb[0].mxu0
  %v968 = vadd.f32 %v171, %v967
  %v969 = vpop.f32.mrb[0].mxu0
  %v970 = vpop.f32.mrb[0].mxu0
  %v971 = vadd.f32 %v171, %v970
  %v972 = vpop.f32.mrb[0].mxu0
  %973 = vmatprep.mubr.bf16.mxu0 0
  %974 = vmatmul.mubr.bf16.gmra.mrb[0].mxu0 %v471
  %v975 = vpop.f32.mrb[0].mxu0
  %v976 = vadd.f32 %v171, %v975
  %v977 = vpop.f32.mrb[0].mxu0
  %v978 = vpop.f32.mrb[0].mxu0
  %v979 = vadd.f32 %v171, %v978
  %v980 = vpop.f32.mrb[0].mxu0
  %981 = vmatprep.mubr.bf16.mxu0 0
  %982 = vmatmul.mubr.bf16.gmra.mrb[0].mxu0 %v472
  %v983 = vpop.f32.mrb[0].mxu0
  %v984 = vadd.f32 %v171, %v983
  %v985 = vpop.f32.mrb[0].mxu0
  %v986 = vpop.f32.mrb[0].mxu0
  %v987 = vadd.f32 %v171, %v986
  %v988 = vpop.f32.mrb[0].mxu0
  %989 = vmatprep.mubr.bf16.mxu0 0
  %990 = vmatmul.mubr.bf16.gmra.mrb[0].mxu0 %v473
  %v991 = vpop.f32.mrb[0].mxu0
  %v992 = vadd.f32 %v171, %v991
  %v993 = vpop.f32.mrb[0].mxu0
  %v994 = vpop.f32.mrb[0].mxu0
  %v995 = vadd.f32 %v171, %v994
  %v996 = vpop.f32.mrb[0].mxu0
  %997 = vmatprep.mubr.bf16.mxu0 0
  %998 = vmatmul.mubr.bf16.gmra.mrb[0].mxu0 %v474
  %v999 = vpop.f32.mrb[0].mxu0
  %v1000 = vadd.f32 %v171, %v999
  %v1001 = vpop.f32.mrb[0].mxu0
  %v1002 = vpop.f32.mrb[0].mxu0
  %v1003 = vadd.f32 %v171, %v1002
  %v1004 = vpop.f32.mrb[0].mxu0
  %1005 = vmatprep.mubr.bf16.mxu0 0
  %1006 = vmatmul.mubr.bf16.gmra.mrb[0].mxu0 %v475
  %v1007 = vpop.f32.mrb[0].mxu0
  %v1008 = vadd.f32 %v171, %v1007
  %v1009 = vpop.f32.mrb[0].mxu0
  %v1010 = vpop.f32.mrb[0].mxu0
  %v1011 = vadd.f32 %v171, %v1010
  %v1012 = vpop.f32.mrb[0].mxu0
  %1013 = vmatprep.mubr.bf16.mxu0 0
  %1014 = vmatmul.mubr.bf16.gmra.mrb[0].mxu0 %v476
  %v1015 = vpop.f32.mrb[0].mxu0
  %v1016 = vadd.f32 %v171, %v1015
  %v1017 = vpop.f32.mrb[0].mxu0
  %v1018 = vpop.f32.mrb[0].mxu0
  %v1019 = vadd.f32 %v171, %v1018
  %v1020 = vpop.f32.mrb[0].mxu0
  %1021 = vmatprep.mubr.bf16.mxu0 0
  %1022 = vmatmul.mubr.bf16.gmra.mrb[0].mxu0 %v477
  %v1023 = vpop.f32.mrb[0].mxu0
  %v1024 = vadd.f32 %v171, %v1023
  %v1025 = vpop.f32.mrb[0].mxu0
  %v1026 = vpop.f32.mrb[0].mxu0
  %v1027 = vadd.f32 %v171, %v1026
  %v1028 = vpop.f32.mrb[0].mxu0
  %1029 = vmatprep.mubr.bf16.mxu0 0
  %1030 = vmatmul.mubr.bf16.gmra.mrb[0].mxu0 %v478
  %v1031 = vpop.f32.mrb[0].mxu0
  %v1032 = vadd.f32 %v171, %v1031
  %v1033 = vpop.f32.mrb[0].mxu0
  %v1034 = vpop.f32.mrb[0].mxu0
  %v1035 = vadd.f32 %v171, %v1034
  %v1036 = vpop.f32.mrb[0].mxu0
  %1037 = vmatprep.mubr.bf16.mxu0 0
  %1038 = vmatmul.mubr.bf16.gmra.mrb[0].mxu0 %v479
  %v1039 = vpop.f32.mrb[0].mxu0
  %v1040 = vadd.f32 %v171, %v1039
  %v1041 = vpop.f32.mrb[0].mxu0
  %v1042 = vpop.f32.mrb[0].mxu0
  %v1043 = vadd.f32 %v171, %v1042
  %v1044 = vpop.f32.mrb[0].mxu0
  %1045 = vmatprep.mubr.bf16.mxu0 0
  %1046 = vmatmul.mubr.bf16.gmra.mrb[0].mxu0 %v480
  %v1047 = vpop.f32.mrb[0].mxu0
  %v1048 = vadd.f32 %v171, %v1047
  %v1049 = vpop.f32.mrb[0].mxu0
  %v1050 = vpop.f32.mrb[0].mxu0
  %v1051 = vadd.f32 %v171, %v1050
  %v1052 = vpop.f32.mrb[0].mxu0
  %1053 = vmatprep.mubr.bf16.mxu0 0
  %1054 = vmatmul.mubr.bf16.gmra.mrb[0].mxu0 %v481
  %v1055 = vpop.f32.mrb[0].mxu0
  %v1056 = vadd.f32 %v171, %v1055
  %v1057 = vpop.f32.mrb[0].mxu0
  %v1058 = vpop.f32.mrb[0].mxu0
  %v1059 = vadd.f32 %v171, %v1058
  %v1060 = vpop.f32.mrb[0].mxu0
  %1061 = vmatprep.mubr.bf16.mxu0 0
  %1062 = vmatmul.mubr.bf16.gmra.mrb[0].mxu0 %v482
  %v1063 = vpop.f32.mrb[0].mxu0
  %v1064 = vadd.f32 %v171, %v1063
  %v1065 = vpop.f32.mrb[0].mxu0
  %v1066 = vpop.f32.mrb[0].mxu0
  %v1067 = vadd.f32 %v171, %v1066
  %v1068 = vpop.f32.mrb[0].mxu0
  %1069 = vmatprep.mubr.bf16.mxu0 0
  %1070 = vmatmul.mubr.bf16.gmra.mrb[0].mxu0 %v483
  %v1071 = vpop.f32.mrb[0].mxu0
  %v1072 = vadd.f32 %v171, %v1071
  %v1073 = vpop.f32.mrb[0].mxu0
  %v1074 = vpop.f32.mrb[0].mxu0
  %v1075 = vadd.f32 %v171, %v1074
  %v1076 = vpop.f32.mrb[0].mxu0
  %1077 = vmatprep.mubr.bf16.mxu0 0
  %1078 = vmatmul.mubr.bf16.gmra.mrb[0].mxu0 %v484
  %v1079 = vpop.f32.mrb[0].mxu0
  %v1080 = vadd.f32 %v171, %v1079
  %v1081 = vpop.f32.mrb[0].mxu0
  %v1082 = vpop.f32.mrb[0].mxu0
  %v1083 = vadd.f32 %v171, %v1082
  %v1084 = vpop.f32.mrb[0].mxu0
  %1085 = vmatprep.mubr.bf16.mxu0 0
  %1086 = vmatmul.mubr.bf16.gmra.mrb[0].mxu0 %v485
  %v1087 = vpop.f32.mrb[0].mxu0
  %v1088 = vadd.f32 %v171, %v1087
  %v1089 = vpop.f32.mrb[0].mxu0
  %v1090 = vpop.f32.mrb[0].mxu0
  %v1091 = vadd.f32 %v171, %v1090
  %v1092 = vpop.f32.mrb[0].mxu0
  %1093 = vmatprep.mubr.bf16.mxu0 0
  %1094 = vmatmul.mubr.bf16.gmra.mrb[0].mxu0 %v486
  %v1095 = vpop.f32.mrb[0].mxu0
  %v1096 = vadd.f32 %v171, %v1095
  %v1097 = vpop.f32.mrb[0].mxu0
  %v1098 = vpop.f32.mrb[0].mxu0
  %v1099 = vadd.f32 %v171, %v1098
  %v1100 = vpop.f32.mrb[0].mxu0
  %1101 = vmatprep.mubr.bf16.mxu0 0
  %1102 = vmatmul.mubr.bf16.gmra.mrb[0].mxu0 %v487
  %v1103 = vpop.f32.mrb[0].mxu0
  %v1104 = vadd.f32 %v171, %v1103
  %v1105 = vpop.f32.mrb[0].mxu0
  %v1106 = vpop.f32.mrb[0].mxu0
  %v1107 = vadd.f32 %v171, %v1106
  %v1108 = vpop.f32.mrb[0].mxu0
  %1109 = vmatprep.mubr.bf16.mxu0 0
  %1110 = vmatmul.mubr.bf16.gmra.mrb[0].mxu0 %v488
  %v1111 = vpop.f32.mrb[0].mxu0
  %v1112 = vadd.f32 %v171, %v1111
  %v1113 = vpop.f32.mrb[0].mxu0
  %v1114 = vpop.f32.mrb[0].mxu0
  %v1115 = vadd.f32 %v171, %v1114
  %v1116 = vpop.f32.mrb[0].mxu0
  %1117 = vmatprep.mubr.bf16.mxu0 0
  %1118 = vmatmul.mubr.bf16.gmra.mrb[0].mxu0 %v489
  %v1119 = vpop.f32.mrb[0].mxu0
  %v1120 = vadd.f32 %v171, %v1119
  %v1121 = vpop.f32.mrb[0].mxu0
  %v1122 = vpop.f32.mrb[0].mxu0
  %v1123 = vadd.f32 %v171, %v1122
  %v1124 = vpop.f32.mrb[0].mxu0
  %1125 = vmatprep.mubr.bf16.mxu0 0
  %1126 = vmatmul.mubr.bf16.gmra.mrb[0].mxu0 %v490
  %v1127 = vpop.f32.mrb[0].mxu0
  %v1128 = vadd.f32 %v171, %v1127
  %v1129 = vpop.f32.mrb[0].mxu0
  %v1130 = vpop.f32.mrb[0].mxu0
  %v1131 = vadd.f32 %v171, %v1130
  %v1132 = vpop.f32.mrb[0].mxu0
  %1133 = vmatprep.mubr.bf16.mxu0 0
  %1134 = vmatmul.mubr.bf16.gmra.mrb[0].mxu0 %v491
  %v1135 = vpop.f32.mrb[0].mxu0
  %v1136 = vadd.f32 %v171, %v1135
  %v1137 = vpop.f32.mrb[0].mxu0
  %v1138 = vpop.f32.mrb[0].mxu0
  %v1139 = vadd.f32 %v171, %v1138
  %v1140 = vpop.f32.mrb[0].mxu0
  %1141 = vmatprep.mubr.bf16.mxu0 0
  %1142 = vmatmul.mubr.bf16.gmra.mrb[0].mxu0 %v492
  %v1143 = vpop.f32.mrb[0].mxu0
  %v1144 = vadd.f32 %v171, %v1143
  %v1145 = vpop.f32.mrb[0].mxu0
  %v1146 = vpop.f32.mrb[0].mxu0
  %v1147 = vadd.f32 %v171, %v1146
  %v1148 = vpop.f32.mrb[0].mxu0
  %1149 = vdwg.mxu0
  %v1150 = vmax.f32 %v640, 0.0
  %v1151 = vmax.f32 %v643, 0.0
  %v1152 = vmax.f32 %v648, 0.0
  %v1153 = vmax.f32 %v651, 0.0
  %v1154 = vmax.f32 %v656, 0.0
  %v1155 = vmax.f32 %v659, 0.0
  %v1156 = vmax.f32 %v664, 0.0
  %v1157 = vmax.f32 %v667, 0.0
  %v1158 = vmax.f32 %v672, 0.0
  %v1159 = vmax.f32 %v675, 0.0
  %v1160 = vmax.f32 %v680, 0.0
  %v1161 = vmax.f32 %v683, 0.0
  %v1162 = vmax.f32 %v688, 0.0
  %v1163 = vmax.f32 %v691, 0.0
  %v1164 = vmax.f32 %v696, 0.0
  %v1165 = vmax.f32 %v699, 0.0
  %v1166 = vmax.f32 %v704, 0.0
  %v1167 = vmax.f32 %v707, 0.0
  %v1168 = vmax.f32 %v712, 0.0
  %v1169 = vmax.f32 %v715, 0.0
  %v1170 = vmax.f32 %v720, 0.0
  %v1171 = vmax.f32 %v723, 0.0
  %v1172 = vmax.f32 %v728, 0.0
  %v1173 = vmax.f32 %v731, 0.0
  %v1174 = vmax.f32 %v736, 0.0
  %v1175 = vmax.f32 %v739, 0.0
  %v1176 = vmax.f32 %v744, 0.0
  %v1177 = vmax.f32 %v747, 0.0
  %v1178 = vmax.f32 %v752, 0.0
  %v1179 = vmax.f32 %v755, 0.0
  %v1180 = vmax.f32 %v760, 0.0
  %v1181 = vmax.f32 %v763, 0.0
  %v1182 = vmax.f32 %v768, 0.0
  %v1183 = vmax.f32 %v771, 0.0
  %v1184 = vmax.f32 %v776, 0.0
  %v1185 = vmax.f32 %v779, 0.0
  %v1186 = vmax.f32 %v784, 0.0
  %v1187 = vmax.f32 %v787, 0.0
  %v1188 = vmax.f32 %v792, 0.0
  %v1189 = vmax.f32 %v795, 0.0
  %v1190 = vmax.f32 %v800, 0.0
  %v1191 = vmax.f32 %v803, 0.0
  %v1192 = vmax.f32 %v808, 0.0
  %v1193 = vmax.f32 %v811, 0.0
  %v1194 = vmax.f32 %v816, 0.0
  %v1195 = vmax.f32 %v819, 0.0
  %v1196 = vmax.f32 %v824, 0.0
  %v1197 = vmax.f32 %v827, 0.0
  %v1198 = vmax.f32 %v832, 0.0
  %v1199 = vmax.f32 %v835, 0.0
  %v1200 = vmax.f32 %v840, 0.0
  %v1201 = vmax.f32 %v843, 0.0
  %v1202 = vmax.f32 %v848, 0.0
  %v1203 = vmax.f32 %v851, 0.0
  %v1204 = vmax.f32 %v856, 0.0
  %v1205 = vmax.f32 %v859, 0.0
  %v1206 = vmax.f32 %v864, 0.0
  %v1207 = vmax.f32 %v867, 0.0
  %v1208 = vmax.f32 %v872, 0.0
  %v1209 = vmax.f32 %v875, 0.0
  %v1210 = vmax.f32 %v880, 0.0
  %v1211 = vmax.f32 %v883, 0.0
  %v1212 = vmax.f32 %v888, 0.0
  %v1213 = vmax.f32 %v891, 0.0
  %v1214 = vmax.f32 %v896, 0.0
  %v1215 = vmax.f32 %v899, 0.0
  %v1216 = vmax.f32 %v904, 0.0
  %v1217 = vmax.f32 %v907, 0.0
  %v1218 = vmax.f32 %v912, 0.0
  %v1219 = vmax.f32 %v915, 0.0
  %v1220 = vmax.f32 %v920, 0.0
  %v1221 = vmax.f32 %v923, 0.0
  %v1222 = vmax.f32 %v928, 0.0
  %v1223 = vmax.f32 %v931, 0.0
  %v1224 = vmax.f32 %v936, 0.0
  %v1225 = vmax.f32 %v939, 0.0
  %v1226 = vmax.f32 %v944, 0.0
  %v1227 = vmax.f32 %v947, 0.0
  %v1228 = vmax.f32 %v952, 0.0
  %v1229 = vmax.f32 %v955, 0.0
  %v1230 = vmax.f32 %v960, 0.0
  %v1231 = vmax.f32 %v963, 0.0
  %v1232 = vmax.f32 %v968, 0.0
  %v1233 = vmax.f32 %v971, 0.0
  %v1234 = vmax.f32 %v976, 0.0
  %v1235 = vmax.f32 %v979, 0.0
  %v1236 = vmax.f32 %v984, 0.0
  %v1237 = vmax.f32 %v987, 0.0
  %v1238 = vmax.f32 %v992, 0.0
  %v1239 = vmax.f32 %v995, 0.0
  %v1240 = vmax.f32 %v1000, 0.0
  %v1241 = vmax.f32 %v1003, 0.0
  %v1242 = vmax.f32 %v1008, 0.0
  %v1243 = vmax.f32 %v1011, 0.0
  %v1244 = vmax.f32 %v1016, 0.0
  %v1245 = vmax.f32 %v1019, 0.0
  %v1246 = vmax.f32 %v1024, 0.0
  %v1247 = vmax.f32 %v1027, 0.0
  %v1248 = vmax.f32 %v1032, 0.0
  %v1249 = vmax.f32 %v1035, 0.0
  %v1250 = vmax.f32 %v1040, 0.0
  %v1251 = vmax.f32 %v1043, 0.0
  %v1252 = vmax.f32 %v1048, 0.0
  %v1253 = vmax.f32 %v1051, 0.0
  %v1254 = vmax.f32 %v1056, 0.0
  %v1255 = vmax.f32 %v1059, 0.0
  %v1256 = vmax.f32 %v1064, 0.0
  %v1257 = vmax.f32 %v1067, 0.0
  %v1258 = vmax.f32 %v1072, 0.0
  %v1259 = vmax.f32 %v1075, 0.0
  %v1260 = vmax.f32 %v1080, 0.0
  %v1261 = vmax.f32 %v1083, 0.0
  %v1262 = vmax.f32 %v1088, 0.0
  %v1263 = vmax.f32 %v1091, 0.0
  %v1264 = vmax.f32 %v1096, 0.0
  %v1265 = vmax.f32 %v1099, 0.0
  %v1266 = vmax.f32 %v1104, 0.0
  %v1267 = vmax.f32 %v1107, 0.0
  %v1268 = vmax.f32 %v1112, 0.0
  %v1269 = vmax.f32 %v1115, 0.0
  %v1270 = vmax.f32 %v1120, 0.0
  %v1271 = vmax.f32 %v1123, 0.0
  %v1272 = vmax.f32 %v1128, 0.0
  %v1273 = vmax.f32 %v1131, 0.0
  %v1274 = vmax.f32 %v1136, 0.0
  %v1275 = vmax.f32 %v1139, 0.0
  %v1276 = vmax.f32 %v1144, 0.0
  %v1277 = vmax.f32 %v1147, 0.0
  %v1278 = vld [vmem:[%s3] sm:$0xff]
  %v1279 = vld [vmem:[%s3 + $0x8] sm:$0xff]
  %v1280 = vld [vmem:[%s3 + $0x10] sm:$0xff]
  %v1281 = vld [vmem:[%s3 + $0x18] sm:$0xff]
  %v1282 = vld [vmem:[%s3 + $0x20] sm:$0xff]
  %v1283 = vld [vmem:[%s3 + $0x28] sm:$0xff]
  %v1284 = vld [vmem:[%s3 + $0x30] sm:$0xff]
  %v1285 = vld [vmem:[%s3 + $0x38] sm:$0xff]
  %v1286 = vld [vmem:[%s3 + $0x40] sm:$0xff]
  %v1287 = vld [vmem:[%s3 + $0x48] sm:$0xff]
  %v1288 = vld [vmem:[%s3 + $0x50] sm:$0xff]
  %v1289 = vld [vmem:[%s3 + $0x58] sm:$0xff]
  %v1290 = vld [vmem:[%s3 + $0x60] sm:$0xff]
  %v1291 = vld [vmem:[%s3 + $0x68] sm:$0xff]
  %v1292 = vld [vmem:[%s3 + $0x70] sm:$0xff]
  %v1293 = vld [vmem:[%s3 + $0x78] sm:$0xff]
  %1294 = vmatprep.subr.mxu0 0.0
  %1295 = vmatpush1.msra.mxu0 %v1278
  %1296 = vmatprep.subr.mxu0 0.0
  %1297 = vmatpush1.msra.mxu0 %v1279
  %1298 = vmatprep.subr.mxu0 0.0
  %1299 = vmatpush1.msra.mxu0 %v1280
  %1300 = vmatprep.subr.mxu0 0.0
  %1301 = vmatpush1.msra.mxu0 %v1281
  %1302 = vmatprep.subr.mxu0 0.0
  %1303 = vmatpush1.msra.mxu0 %v1282
  %1304 = vmatprep.subr.mxu0 0.0
  %1305 = vmatpush1.msra.mxu0 %v1283
  %1306 = vmatprep.subr.mxu0 0.0
  %1307 = vmatpush1.msra.mxu0 %v1284
  %1308 = vmatprep.subr.mxu0 0.0
  %1309 = vmatpush1.msra.mxu0 %v1285
  %1310 = vmatprep.subr.mxu0 0.0
  %1311 = vmatpush1.msra.mxu0 %v1286
  %1312 = vmatprep.subr.mxu0 0.0
  %1313 = vmatpush1.msra.mxu0 %v1287
  %1314 = vmatprep.subr.mxu0 0.0
  %1315 = vmatpush1.msra.mxu0 %v1288
  %1316 = vmatprep.subr.mxu0 0.0
  %1317 = vmatpush1.msra.mxu0 %v1289
  %1318 = vmatprep.subr.mxu0 0.0
  %1319 = vmatpush1.msra.mxu0 %v1290
  %1320 = vmatprep.subr.mxu0 0.0
  %1321 = vmatpush1.msra.mxu0 %v1291
  %1322 = vmatprep.subr.mxu0 0.0
  %1323 = vmatpush1.msra.mxu0 %v1292
  %1324 = vmatprep.subr.mxu0 0.0
  %1325 = vmatpush1.msra.mxu0 %v1293
  %1326 = vmatprep.subr.mxu0 0.0
  %1327 = vmatpush1.msra.mxu0 0.0
  %1328 = vmatprep.subr.mxu0 0.0
  %1329 = vmatpush1.msra.mxu0 0.0
  %1330 = vmatprep.subr.mxu0 0.0
  %1331 = vmatpush1.msra.mxu0 0.0
  %1332 = vmatprep.subr.mxu0 0.0
  %1333 = vmatpush1.msra.mxu0 0.0
  %1334 = vmatprep.subr.mxu0 0.0
  %1335 = vmatpush1.msra.mxu0 0.0
  %1336 = vmatprep.subr.mxu0 0.0
  %1337 = vmatpush1.msra.mxu0 0.0
  %1338 = vmatprep.subr.mxu0 0.0
  %1339 = vmatpush1.msra.mxu0 0.0
  %1340 = vmatprep.subr.mxu0 0.0
  %1341 = vmatpush1.msra.mxu0 0.0
  %1342 = vmatprep.subr.mxu0 0.0
  %1343 = vmatpush1.msra.mxu0 0.0
  %1344 = vmatprep.subr.mxu0 0.0
  %1345 = vmatpush1.msra.mxu0 0.0
  %1346 = vmatprep.subr.mxu0 0.0
  %1347 = vmatpush1.msra.mxu0 0.0
  %1348 = vmatprep.subr.mxu0 0.0
  %1349 = vmatpush1.msra.mxu0 0.0
  %1350 = vmatprep.subr.mxu0 0.0
  %1351 = vmatpush1.msra.mxu0 0.0
  %1352 = vmatprep.subr.mxu0 0.0
  %1353 = vmatpush1.msra.mxu0 0.0
  %1354 = vmatprep.subr.mxu0 0.0
  %1355 = vmatpush1.msra.mxu0 0.0
  %1356 = vmatprep.subr.mxu0 0.0
  %1357 = vmatpush1.msra.mxu0 0.0
  %1358 = vmatprep.mubr.f32.mxu0 0.0
  %1359 = vmatmul.mubr.f32.gmra.mrb[0].mxu0 %v1150
  %v1360 = vpop.f32.mrb[0].mxu0
  %v1361 = vadd.f32 0.0, %v1360
  %v1362 = vpop.f32.mrb[0].mxu0
  %1363 = vmatprep.mubr.f32.mxu0 0.0
  %1364 = vmatmul.mubr.f32.gmra.mrb[0].mxu0 %v1151
  %v1365 = vpop.f32.mrb[0].mxu0
  %v1366 = vadd.f32 0.0, %v1365
  %v1367 = vpop.f32.mrb[0].mxu0
  %1368 = vmatprep.mubr.f32.mxu0 0.0
  %1369 = vmatmul.mubr.f32.gmra.mrb[0].mxu0 %v1152
  %v1370 = vpop.f32.mrb[0].mxu0
  %v1371 = vadd.f32 0.0, %v1370
  %v1372 = vpop.f32.mrb[0].mxu0
  %1373 = vmatprep.mubr.f32.mxu0 0.0
  %1374 = vmatmul.mubr.f32.gmra.mrb[0].mxu0 %v1153
  %v1375 = vpop.f32.mrb[0].mxu0
  %v1376 = vadd.f32 0.0, %v1375
  %v1377 = vpop.f32.mrb[0].mxu0
  %1378 = vmatprep.mubr.f32.mxu0 0.0
  %1379 = vmatmul.mubr.f32.gmra.mrb[0].mxu0 %v1154
  %v1380 = vpop.f32.mrb[0].mxu0
  %v1381 = vadd.f32 0.0, %v1380
  %v1382 = vpop.f32.mrb[0].mxu0
  %1383 = vmatprep.mubr.f32.mxu0 0.0
  %1384 = vmatmul.mubr.f32.gmra.mrb[0].mxu0 %v1155
  %v1385 = vpop.f32.mrb[0].mxu0
  %v1386 = vadd.f32 0.0, %v1385
  %v1387 = vpop.f32.mrb[0].mxu0
  %1388 = vmatprep.mubr.f32.mxu0 0.0
  %1389 = vmatmul.mubr.f32.gmra.mrb[0].mxu0 %v1156
  %v1390 = vpop.f32.mrb[0].mxu0
  %v1391 = vadd.f32 0.0, %v1390
  %v1392 = vpop.f32.mrb[0].mxu0
  %1393 = vmatprep.mubr.f32.mxu0 0.0
  %1394 = vmatmul.mubr.f32.gmra.mrb[0].mxu0 %v1157
  %v1395 = vpop.f32.mrb[0].mxu0
  %v1396 = vadd.f32 0.0, %v1395
  %v1397 = vpop.f32.mrb[0].mxu0
  %1398 = vmatprep.mubr.f32.mxu0 0.0
  %1399 = vmatmul.mubr.f32.gmra.mrb[0].mxu0 %v1158
  %v1400 = vpop.f32.mrb[0].mxu0
  %v1401 = vadd.f32 0.0, %v1400
  %v1402 = vpop.f32.mrb[0].mxu0
  %1403 = vmatprep.mubr.f32.mxu0 0.0
  %1404 = vmatmul.mubr.f32.gmra.mrb[0].mxu0 %v1159
  %v1405 = vpop.f32.mrb[0].mxu0
  %v1406 = vadd.f32 0.0, %v1405
  %v1407 = vpop.f32.mrb[0].mxu0
  %1408 = vmatprep.mubr.f32.mxu0 0.0
  %1409 = vmatmul.mubr.f32.gmra.mrb[0].mxu0 %v1160
  %v1410 = vpop.f32.mrb[0].mxu0
  %v1411 = vadd.f32 0.0, %v1410
  %v1412 = vpop.f32.mrb[0].mxu0
  %1413 = vmatprep.mubr.f32.mxu0 0.0
  %1414 = vmatmul.mubr.f32.gmra.mrb[0].mxu0 %v1161
  %v1415 = vpop.f32.mrb[0].mxu0
  %v1416 = vadd.f32 0.0, %v1415
  %v1417 = vpop.f32.mrb[0].mxu0
  %1418 = vmatprep.mubr.f32.mxu0 0.0
  %1419 = vmatmul.mubr.f32.gmra.mrb[0].mxu0 %v1162
  %v1420 = vpop.f32.mrb[0].mxu0
  %v1421 = vadd.f32 0.0, %v1420
  %v1422 = vpop.f32.mrb[0].mxu0
  %1423 = vmatprep.mubr.f32.mxu0 0.0
  %1424 = vmatmul.mubr.f32.gmra.mrb[0].mxu0 %v1163
  %v1425 = vpop.f32.mrb[0].mxu0
  %v1426 = vadd.f32 0.0, %v1425
  %v1427 = vpop.f32.mrb[0].mxu0
  %1428 = vmatprep.mubr.f32.mxu0 0.0
  %1429 = vmatmul.mubr.f32.gmra.mrb[0].mxu0 %v1164
  %v1430 = vpop.f32.mrb[0].mxu0
  %v1431 = vadd.f32 0.0, %v1430
  %v1432 = vpop.f32.mrb[0].mxu0
  %1433 = vmatprep.mubr.f32.mxu0 0.0
  %1434 = vmatmul.mubr.f32.gmra.mrb[0].mxu0 %v1165
  %v1435 = vpop.f32.mrb[0].mxu0
  %v1436 = vadd.f32 0.0, %v1435
  %v1437 = vpop.f32.mrb[0].mxu0
  %1438 = vmatprep.mubr.f32.mxu0 0.0
  %1439 = vmatmul.mubr.f32.gmra.mrb[0].mxu0 %v1166
  %v1440 = vpop.f32.mrb[0].mxu0
  %v1441 = vadd.f32 0.0, %v1440
  %v1442 = vpop.f32.mrb[0].mxu0
  %1443 = vmatprep.mubr.f32.mxu0 0.0
  %1444 = vmatmul.mubr.f32.gmra.mrb[0].mxu0 %v1167
  %v1445 = vpop.f32.mrb[0].mxu0
  %v1446 = vadd.f32 0.0, %v1445
  %v1447 = vpop.f32.mrb[0].mxu0
  %1448 = vmatprep.mubr.f32.mxu0 0.0
  %1449 = vmatmul.mubr.f32.gmra.mrb[0].mxu0 %v1168
  %v1450 = vpop.f32.mrb[0].mxu0
  %v1451 = vadd.f32 0.0, %v1450
  %v1452 = vpop.f32.mrb[0].mxu0
  %1453 = vmatprep.mubr.f32.mxu0 0.0
  %1454 = vmatmul.mubr.f32.gmra.mrb[0].mxu0 %v1169
  %v1455 = vpop.f32.mrb[0].mxu0
  %v1456 = vadd.f32 0.0, %v1455
  %v1457 = vpop.f32.mrb[0].mxu0
  %1458 = vmatprep.mubr.f32.mxu0 0.0
  %1459 = vmatmul.mubr.f32.gmra.mrb[0].mxu0 %v1170
  %v1460 = vpop.f32.mrb[0].mxu0
  %v1461 = vadd.f32 0.0, %v1460
  %v1462 = vpop.f32.mrb[0].mxu0
  %1463 = vmatprep.mubr.f32.mxu0 0.0
  %1464 = vmatmul.mubr.f32.gmra.mrb[0].mxu0 %v1171
  %v1465 = vpop.f32.mrb[0].mxu0
  %v1466 = vadd.f32 0.0, %v1465
  %v1467 = vpop.f32.mrb[0].mxu0
  %1468 = vmatprep.mubr.f32.mxu0 0.0
  %1469 = vmatmul.mubr.f32.gmra.mrb[0].mxu0 %v1172
  %v1470 = vpop.f32.mrb[0].mxu0
  %v1471 = vadd.f32 0.0, %v1470
  %v1472 = vpop.f32.mrb[0].mxu0
  %1473 = vmatprep.mubr.f32.mxu0 0.0
  %1474 = vmatmul.mubr.f32.gmra.mrb[0].mxu0 %v1173
  %v1475 = vpop.f32.mrb[0].mxu0
  %v1476 = vadd.f32 0.0, %v1475
  %v1477 = vpop.f32.mrb[0].mxu0
  %1478 = vmatprep.mubr.f32.mxu0 0.0
  %1479 = vmatmul.mubr.f32.gmra.mrb[0].mxu0 %v1174
  %v1480 = vpop.f32.mrb[0].mxu0
  %v1481 = vadd.f32 0.0, %v1480
  %v1482 = vpop.f32.mrb[0].mxu0
  %1483 = vmatprep.mubr.f32.mxu0 0.0
  %1484 = vmatmul.mubr.f32.gmra.mrb[0].mxu0 %v1175
  %v1485 = vpop.f32.mrb[0].mxu0
  %v1486 = vadd.f32 0.0, %v1485
  %v1487 = vpop.f32.mrb[0].mxu0
  %1488 = vmatprep.mubr.f32.mxu0 0.0
  %1489 = vmatmul.mubr.f32.gmra.mrb[0].mxu0 %v1176
  %v1490 = vpop.f32.mrb[0].mxu0
  %v1491 = vadd.f32 0.0, %v1490
  %v1492 = vpop.f32.mrb[0].mxu0
  %1493 = vmatprep.mubr.f32.mxu0 0.0
  %1494 = vmatmul.mubr.f32.gmra.mrb[0].mxu0 %v1177
  %v1495 = vpop.f32.mrb[0].mxu0
  %v1496 = vadd.f32 0.0, %v1495
  %v1497 = vpop.f32.mrb[0].mxu0
  %1498 = vmatprep.mubr.f32.mxu0 0.0
  %1499 = vmatmul.mubr.f32.gmra.mrb[0].mxu0 %v1178
  %v1500 = vpop.f32.mrb[0].mxu0
  %v1501 = vadd.f32 0.0, %v1500
  %v1502 = vpop.f32.mrb[0].mxu0
  %1503 = vmatprep.mubr.f32.mxu0 0.0
  %1504 = vmatmul.mubr.f32.gmra.mrb[0].mxu0 %v1179
  %v1505 = vpop.f32.mrb[0].mxu0
  %v1506 = vadd.f32 0.0, %v1505
  %v1507 = vpop.f32.mrb[0].mxu0
  %1508 = vmatprep.mubr.f32.mxu0 0.0
  %1509 = vmatmul.mubr.f32.gmra.mrb[0].mxu0 %v1180
  %v1510 = vpop.f32.mrb[0].mxu0
  %v1511 = vadd.f32 0.0, %v1510
  %v1512 = vpop.f32.mrb[0].mxu0
  %1513 = vmatprep.mubr.f32.mxu0 0.0
  %1514 = vmatmul.mubr.f32.gmra.mrb[0].mxu0 %v1181
  %v1515 = vpop.f32.mrb[0].mxu0
  %v1516 = vadd.f32 0.0, %v1515
  %v1517 = vpop.f32.mrb[0].mxu0
  %1518 = vmatprep.mubr.f32.mxu0 0.0
  %1519 = vmatmul.mubr.f32.gmra.mrb[0].mxu0 %v1182
  %v1520 = vpop.f32.mrb[0].mxu0
  %v1521 = vadd.f32 0.0, %v1520
  %v1522 = vpop.f32.mrb[0].mxu0
  %1523 = vmatprep.mubr.f32.mxu0 0.0
  %1524 = vmatmul.mubr.f32.gmra.mrb[0].mxu0 %v1183
  %v1525 = vpop.f32.mrb[0].mxu0
  %v1526 = vadd.f32 0.0, %v1525
  %v1527 = vpop.f32.mrb[0].mxu0
  %1528 = vmatprep.mubr.f32.mxu0 0.0
  %1529 = vmatmul.mubr.f32.gmra.mrb[0].mxu0 %v1184
  %v1530 = vpop.f32.mrb[0].mxu0
  %v1531 = vadd.f32 0.0, %v1530
  %v1532 = vpop.f32.mrb[0].mxu0
  %1533 = vmatprep.mubr.f32.mxu0 0.0
  %1534 = vmatmul.mubr.f32.gmra.mrb[0].mxu0 %v1185
  %v1535 = vpop.f32.mrb[0].mxu0
  %v1536 = vadd.f32 0.0, %v1535
  %v1537 = vpop.f32.mrb[0].mxu0
  %1538 = vmatprep.mubr.f32.mxu0 0.0
  %1539 = vmatmul.mubr.f32.gmra.mrb[0].mxu0 %v1186
  %v1540 = vpop.f32.mrb[0].mxu0
  %v1541 = vadd.f32 0.0, %v1540
  %v1542 = vpop.f32.mrb[0].mxu0
  %1543 = vmatprep.mubr.f32.mxu0 0.0
  %1544 = vmatmul.mubr.f32.gmra.mrb[0].mxu0 %v1187
  %v1545 = vpop.f32.mrb[0].mxu0
  %v1546 = vadd.f32 0.0, %v1545
  %v1547 = vpop.f32.mrb[0].mxu0
  %1548 = vmatprep.mubr.f32.mxu0 0.0
  %1549 = vmatmul.mubr.f32.gmra.mrb[0].mxu0 %v1188
  %v1550 = vpop.f32.mrb[0].mxu0
  %v1551 = vadd.f32 0.0, %v1550
  %v1552 = vpop.f32.mrb[0].mxu0
  %1553 = vmatprep.mubr.f32.mxu0 0.0
  %1554 = vmatmul.mubr.f32.gmra.mrb[0].mxu0 %v1189
  %v1555 = vpop.f32.mrb[0].mxu0
  %v1556 = vadd.f32 0.0, %v1555
  %v1557 = vpop.f32.mrb[0].mxu0
  %1558 = vmatprep.mubr.f32.mxu0 0.0
  %1559 = vmatmul.mubr.f32.gmra.mrb[0].mxu0 %v1190
  %v1560 = vpop.f32.mrb[0].mxu0
  %v1561 = vadd.f32 0.0, %v1560
  %v1562 = vpop.f32.mrb[0].mxu0
  %1563 = vmatprep.mubr.f32.mxu0 0.0
  %1564 = vmatmul.mubr.f32.gmra.mrb[0].mxu0 %v1191
  %v1565 = vpop.f32.mrb[0].mxu0
  %v1566 = vadd.f32 0.0, %v1565
  %v1567 = vpop.f32.mrb[0].mxu0
  %1568 = vmatprep.mubr.f32.mxu0 0.0
  %1569 = vmatmul.mubr.f32.gmra.mrb[0].mxu0 %v1192
  %v1570 = vpop.f32.mrb[0].mxu0
  %v1571 = vadd.f32 0.0, %v1570
  %v1572 = vpop.f32.mrb[0].mxu0
  %1573 = vmatprep.mubr.f32.mxu0 0.0
  %1574 = vmatmul.mubr.f32.gmra.mrb[0].mxu0 %v1193
  %v1575 = vpop.f32.mrb[0].mxu0
  %v1576 = vadd.f32 0.0, %v1575
  %v1577 = vpop.f32.mrb[0].mxu0
  %1578 = vmatprep.mubr.f32.mxu0 0.0
  %1579 = vmatmul.mubr.f32.gmra.mrb[0].mxu0 %v1194
  %v1580 = vpop.f32.mrb[0].mxu0
  %v1581 = vadd.f32 0.0, %v1580
  %v1582 = vpop.f32.mrb[0].mxu0
  %1583 = vmatprep.mubr.f32.mxu0 0.0
  %1584 = vmatmul.mubr.f32.gmra.mrb[0].mxu0 %v1195
  %v1585 = vpop.f32.mrb[0].mxu0
  %v1586 = vadd.f32 0.0, %v1585
  %v1587 = vpop.f32.mrb[0].mxu0
  %1588 = vmatprep.mubr.f32.mxu0 0.0
  %1589 = vmatmul.mubr.f32.gmra.mrb[0].mxu0 %v1196
  %v1590 = vpop.f32.mrb[0].mxu0
  %v1591 = vadd.f32 0.0, %v1590
  %v1592 = vpop.f32.mrb[0].mxu0
  %1593 = vmatprep.mubr.f32.mxu0 0.0
  %1594 = vmatmul.mubr.f32.gmra.mrb[0].mxu0 %v1197
  %v1595 = vpop.f32.mrb[0].mxu0
  %v1596 = vadd.f32 0.0, %v1595
  %v1597 = vpop.f32.mrb[0].mxu0
  %1598 = vmatprep.mubr.f32.mxu0 0.0
  %1599 = vmatmul.mubr.f32.gmra.mrb[0].mxu0 %v1198
  %v1600 = vpop.f32.mrb[0].mxu0
  %v1601 = vadd.f32 0.0, %v1600
  %v1602 = vpop.f32.mrb[0].mxu0
  %1603 = vmatprep.mubr.f32.mxu0 0.0
  %1604 = vmatmul.mubr.f32.gmra.mrb[0].mxu0 %v1199
  %v1605 = vpop.f32.mrb[0].mxu0
  %v1606 = vadd.f32 0.0, %v1605
  %v1607 = vpop.f32.mrb[0].mxu0
  %1608 = vmatprep.mubr.f32.mxu0 0.0
  %1609 = vmatmul.mubr.f32.gmra.mrb[0].mxu0 %v1200
  %v1610 = vpop.f32.mrb[0].mxu0
  %v1611 = vadd.f32 0.0, %v1610
  %v1612 = vpop.f32.mrb[0].mxu0
  %1613 = vmatprep.mubr.f32.mxu0 0.0
  %1614 = vmatmul.mubr.f32.gmra.mrb[0].mxu0 %v1201
  %v1615 = vpop.f32.mrb[0].mxu0
  %v1616 = vadd.f32 0.0, %v1615
  %v1617 = vpop.f32.mrb[0].mxu0
  %1618 = vmatprep.mubr.f32.mxu0 0.0
  %1619 = vmatmul.mubr.f32.gmra.mrb[0].mxu0 %v1202
  %v1620 = vpop.f32.mrb[0].mxu0
  %v1621 = vadd.f32 0.0, %v1620
  %v1622 = vpop.f32.mrb[0].mxu0
  %1623 = vmatprep.mubr.f32.mxu0 0.0
  %1624 = vmatmul.mubr.f32.gmra.mrb[0].mxu0 %v1203
  %v1625 = vpop.f32.mrb[0].mxu0
  %v1626 = vadd.f32 0.0, %v1625
  %v1627 = vpop.f32.mrb[0].mxu0
  %1628 = vmatprep.mubr.f32.mxu0 0.0
  %1629 = vmatmul.mubr.f32.gmra.mrb[0].mxu0 %v1204
  %v1630 = vpop.f32.mrb[0].mxu0
  %v1631 = vadd.f32 0.0, %v1630
  %v1632 = vpop.f32.mrb[0].mxu0
  %1633 = vmatprep.mubr.f32.mxu0 0.0
  %1634 = vmatmul.mubr.f32.gmra.mrb[0].mxu0 %v1205
  %v1635 = vpop.f32.mrb[0].mxu0
  %v1636 = vadd.f32 0.0, %v1635
  %v1637 = vpop.f32.mrb[0].mxu0
  %1638 = vmatprep.mubr.f32.mxu0 0.0
  %1639 = vmatmul.mubr.f32.gmra.mrb[0].mxu0 %v1206
  %v1640 = vpop.f32.mrb[0].mxu0
  %v1641 = vadd.f32 0.0, %v1640
  %v1642 = vpop.f32.mrb[0].mxu0
  %1643 = vmatprep.mubr.f32.mxu0 0.0
  %1644 = vmatmul.mubr.f32.gmra.mrb[0].mxu0 %v1207
  %v1645 = vpop.f32.mrb[0].mxu0
  %v1646 = vadd.f32 0.0, %v1645
  %v1647 = vpop.f32.mrb[0].mxu0
  %1648 = vmatprep.mubr.f32.mxu0 0.0
  %1649 = vmatmul.mubr.f32.gmra.mrb[0].mxu0 %v1208
  %v1650 = vpop.f32.mrb[0].mxu0
  %v1651 = vadd.f32 0.0, %v1650
  %v1652 = vpop.f32.mrb[0].mxu0
  %1653 = vmatprep.mubr.f32.mxu0 0.0
  %1654 = vmatmul.mubr.f32.gmra.mrb[0].mxu0 %v1209
  %v1655 = vpop.f32.mrb[0].mxu0
  %v1656 = vadd.f32 0.0, %v1655
  %v1657 = vpop.f32.mrb[0].mxu0
  %1658 = vmatprep.mubr.f32.mxu0 0.0
  %1659 = vmatmul.mubr.f32.gmra.mrb[0].mxu0 %v1210
  %v1660 = vpop.f32.mrb[0].mxu0
  %v1661 = vadd.f32 0.0, %v1660
  %v1662 = vpop.f32.mrb[0].mxu0
  %1663 = vmatprep.mubr.f32.mxu0 0.0
  %1664 = vmatmul.mubr.f32.gmra.mrb[0].mxu0 %v1211
  %v1665 = vpop.f32.mrb[0].mxu0
  %v1666 = vadd.f32 0.0, %v1665
  %v1667 = vpop.f32.mrb[0].mxu0
  %1668 = vmatprep.mubr.f32.mxu0 0.0
  %1669 = vmatmul.mubr.f32.gmra.mrb[0].mxu0 %v1212
  %v1670 = vpop.f32.mrb[0].mxu0
  %v1671 = vadd.f32 0.0, %v1670
  %v1672 = vpop.f32.mrb[0].mxu0
  %1673 = vmatprep.mubr.f32.mxu0 0.0
  %1674 = vmatmul.mubr.f32.gmra.mrb[0].mxu0 %v1213
  %v1675 = vpop.f32.mrb[0].mxu0
  %v1676 = vadd.f32 0.0, %v1675
  %v1677 = vpop.f32.mrb[0].mxu0
  %1678 = vmatprep.mubr.f32.mxu0 0.0
  %1679 = vmatmul.mubr.f32.gmra.mrb[0].mxu0 %v1214
  %v1680 = vpop.f32.mrb[0].mxu0
  %v1681 = vadd.f32 0.0, %v1680
  %v1682 = vpop.f32.mrb[0].mxu0
  %1683 = vmatprep.mubr.f32.mxu0 0.0
  %1684 = vmatmul.mubr.f32.gmra.mrb[0].mxu0 %v1215
  %v1685 = vpop.f32.mrb[0].mxu0
  %v1686 = vadd.f32 0.0, %v1685
  %v1687 = vpop.f32.mrb[0].mxu0
  %1688 = vmatprep.mubr.f32.mxu0 0.0
  %1689 = vmatmul.mubr.f32.gmra.mrb[0].mxu0 %v1216
  %v1690 = vpop.f32.mrb[0].mxu0
  %v1691 = vadd.f32 0.0, %v1690
  %v1692 = vpop.f32.mrb[0].mxu0
  %1693 = vmatprep.mubr.f32.mxu0 0.0
  %1694 = vmatmul.mubr.f32.gmra.mrb[0].mxu0 %v1217
  %v1695 = vpop.f32.mrb[0].mxu0
  %v1696 = vadd.f32 0.0, %v1695
  %v1697 = vpop.f32.mrb[0].mxu0
  %1698 = vmatprep.mubr.f32.mxu0 0.0
  %1699 = vmatmul.mubr.f32.gmra.mrb[0].mxu0 %v1218
  %v1700 = vpop.f32.mrb[0].mxu0
  %v1701 = vadd.f32 0.0, %v1700
  %v1702 = vpop.f32.mrb[0].mxu0
  %1703 = vmatprep.mubr.f32.mxu0 0.0
  %1704 = vmatmul.mubr.f32.gmra.mrb[0].mxu0 %v1219
  %v1705 = vpop.f32.mrb[0].mxu0
  %v1706 = vadd.f32 0.0, %v1705
  %v1707 = vpop.f32.mrb[0].mxu0
  %1708 = vmatprep.mubr.f32.mxu0 0.0
  %1709 = vmatmul.mubr.f32.gmra.mrb[0].mxu0 %v1220
  %v1710 = vpop.f32.mrb[0].mxu0
  %v1711 = vadd.f32 0.0, %v1710
  %v1712 = vpop.f32.mrb[0].mxu0
  %1713 = vmatprep.mubr.f32.mxu0 0.0
  %1714 = vmatmul.mubr.f32.gmra.mrb[0].mxu0 %v1221
  %v1715 = vpop.f32.mrb[0].mxu0
  %v1716 = vadd.f32 0.0, %v1715
  %v1717 = vpop.f32.mrb[0].mxu0
  %1718 = vmatprep.mubr.f32.mxu0 0.0
  %1719 = vmatmul.mubr.f32.gmra.mrb[0].mxu0 %v1222
  %v1720 = vpop.f32.mrb[0].mxu0
  %v1721 = vadd.f32 0.0, %v1720
  %v1722 = vpop.f32.mrb[0].mxu0
  %1723 = vmatprep.mubr.f32.mxu0 0.0
  %1724 = vmatmul.mubr.f32.gmra.mrb[0].mxu0 %v1223
  %v1725 = vpop.f32.mrb[0].mxu0
  %v1726 = vadd.f32 0.0, %v1725
  %v1727 = vpop.f32.mrb[0].mxu0
  %1728 = vmatprep.mubr.f32.mxu0 0.0
  %1729 = vmatmul.mubr.f32.gmra.mrb[0].mxu0 %v1224
  %v1730 = vpop.f32.mrb[0].mxu0
  %v1731 = vadd.f32 0.0, %v1730
  %v1732 = vpop.f32.mrb[0].mxu0
  %1733 = vmatprep.mubr.f32.mxu0 0.0
  %1734 = vmatmul.mubr.f32.gmra.mrb[0].mxu0 %v1225
  %v1735 = vpop.f32.mrb[0].mxu0
  %v1736 = vadd.f32 0.0, %v1735
  %v1737 = vpop.f32.mrb[0].mxu0
  %1738 = vmatprep.mubr.f32.mxu0 0.0
  %1739 = vmatmul.mubr.f32.gmra.mrb[0].mxu0 %v1226
  %v1740 = vpop.f32.mrb[0].mxu0
  %v1741 = vadd.f32 0.0, %v1740
  %v1742 = vpop.f32.mrb[0].mxu0
  %1743 = vmatprep.mubr.f32.mxu0 0.0
  %1744 = vmatmul.mubr.f32.gmra.mrb[0].mxu0 %v1227
  %v1745 = vpop.f32.mrb[0].mxu0
  %v1746 = vadd.f32 0.0, %v1745
  %v1747 = vpop.f32.mrb[0].mxu0
  %1748 = vmatprep.mubr.f32.mxu0 0.0
  %1749 = vmatmul.mubr.f32.gmra.mrb[0].mxu0 %v1228
  %v1750 = vpop.f32.mrb[0].mxu0
  %v1751 = vadd.f32 0.0, %v1750
  %v1752 = vpop.f32.mrb[0].mxu0
  %1753 = vmatprep.mubr.f32.mxu0 0.0
  %1754 = vmatmul.mubr.f32.gmra.mrb[0].mxu0 %v1229
  %v1755 = vpop.f32.mrb[0].mxu0
  %v1756 = vadd.f32 0.0, %v1755
  %v1757 = vpop.f32.mrb[0].mxu0
  %1758 = vmatprep.mubr.f32.mxu0 0.0
  %1759 = vmatmul.mubr.f32.gmra.mrb[0].mxu0 %v1230
  %v1760 = vpop.f32.mrb[0].mxu0
  %v1761 = vadd.f32 0.0, %v1760
  %v1762 = vpop.f32.mrb[0].mxu0
  %1763 = vmatprep.mubr.f32.mxu0 0.0
  %1764 = vmatmul.mubr.f32.gmra.mrb[0].mxu0 %v1231
  %v1765 = vpop.f32.mrb[0].mxu0
  %v1766 = vadd.f32 0.0, %v1765
  %v1767 = vpop.f32.mrb[0].mxu0
  %1768 = vmatprep.mubr.f32.mxu0 0.0
  %1769 = vmatmul.mubr.f32.gmra.mrb[0].mxu0 %v1232
  %v1770 = vpop.f32.mrb[0].mxu0
  %v1771 = vadd.f32 0.0, %v1770
  %v1772 = vpop.f32.mrb[0].mxu0
  %1773 = vmatprep.mubr.f32.mxu0 0.0
  %1774 = vmatmul.mubr.f32.gmra.mrb[0].mxu0 %v1233
  %v1775 = vpop.f32.mrb[0].mxu0
  %v1776 = vadd.f32 0.0, %v1775
  %v1777 = vpop.f32.mrb[0].mxu0
  %1778 = vmatprep.mubr.f32.mxu0 0.0
  %1779 = vmatmul.mubr.f32.gmra.mrb[0].mxu0 %v1234
  %v1780 = vpop.f32.mrb[0].mxu0
  %v1781 = vadd.f32 0.0, %v1780
  %v1782 = vpop.f32.mrb[0].mxu0
  %1783 = vmatprep.mubr.f32.mxu0 0.0
  %1784 = vmatmul.mubr.f32.gmra.mrb[0].mxu0 %v1235
  %v1785 = vpop.f32.mrb[0].mxu0
  %v1786 = vadd.f32 0.0, %v1785
  %v1787 = vpop.f32.mrb[0].mxu0
  %1788 = vmatprep.mubr.f32.mxu0 0.0
  %1789 = vmatmul.mubr.f32.gmra.mrb[0].mxu0 %v1236
  %v1790 = vpop.f32.mrb[0].mxu0
  %v1791 = vadd.f32 0.0, %v1790
  %v1792 = vpop.f32.mrb[0].mxu0
  %1793 = vmatprep.mubr.f32.mxu0 0.0
  %1794 = vmatmul.mubr.f32.gmra.mrb[0].mxu0 %v1237
  %v1795 = vpop.f32.mrb[0].mxu0
  %v1796 = vadd.f32 0.0, %v1795
  %v1797 = vpop.f32.mrb[0].mxu0
  %1798 = vmatprep.mubr.f32.mxu0 0.0
  %1799 = vmatmul.mubr.f32.gmra.mrb[0].mxu0 %v1238
  %v1800 = vpop.f32.mrb[0].mxu0
  %v1801 = vadd.f32 0.0, %v1800
  %v1802 = vpop.f32.mrb[0].mxu0
  %1803 = vmatprep.mubr.f32.mxu0 0.0
  %1804 = vmatmul.mubr.f32.gmra.mrb[0].mxu0 %v1239
  %v1805 = vpop.f32.mrb[0].mxu0
  %v1806 = vadd.f32 0.0, %v1805
  %v1807 = vpop.f32.mrb[0].mxu0
  %1808 = vmatprep.mubr.f32.mxu0 0.0
  %1809 = vmatmul.mubr.f32.gmra.mrb[0].mxu0 %v1240
  %v1810 = vpop.f32.mrb[0].mxu0
  %v1811 = vadd.f32 0.0, %v1810
  %v1812 = vpop.f32.mrb[0].mxu0
  %1813 = vmatprep.mubr.f32.mxu0 0.0
  %1814 = vmatmul.mubr.f32.gmra.mrb[0].mxu0 %v1241
  %v1815 = vpop.f32.mrb[0].mxu0
  %v1816 = vadd.f32 0.0, %v1815
  %v1817 = vpop.f32.mrb[0].mxu0
  %1818 = vmatprep.mubr.f32.mxu0 0.0
  %1819 = vmatmul.mubr.f32.gmra.mrb[0].mxu0 %v1242
  %v1820 = vpop.f32.mrb[0].mxu0
  %v1821 = vadd.f32 0.0, %v1820
  %v1822 = vpop.f32.mrb[0].mxu0
  %1823 = vmatprep.mubr.f32.mxu0 0.0
  %1824 = vmatmul.mubr.f32.gmra.mrb[0].mxu0 %v1243
  %v1825 = vpop.f32.mrb[0].mxu0
  %v1826 = vadd.f32 0.0, %v1825
  %v1827 = vpop.f32.mrb[0].mxu0
  %1828 = vmatprep.mubr.f32.mxu0 0.0
  %1829 = vmatmul.mubr.f32.gmra.mrb[0].mxu0 %v1244
  %v1830 = vpop.f32.mrb[0].mxu0
  %v1831 = vadd.f32 0.0, %v1830
  %v1832 = vpop.f32.mrb[0].mxu0
  %1833 = vmatprep.mubr.f32.mxu0 0.0
  %1834 = vmatmul.mubr.f32.gmra.mrb[0].mxu0 %v1245
  %v1835 = vpop.f32.mrb[0].mxu0
  %v1836 = vadd.f32 0.0, %v1835
  %v1837 = vpop.f32.mrb[0].mxu0
  %1838 = vmatprep.mubr.f32.mxu0 0.0
  %1839 = vmatmul.mubr.f32.gmra.mrb[0].mxu0 %v1246
  %v1840 = vpop.f32.mrb[0].mxu0
  %v1841 = vadd.f32 0.0, %v1840
  %v1842 = vpop.f32.mrb[0].mxu0
  %1843 = vmatprep.mubr.f32.mxu0 0.0
  %1844 = vmatmul.mubr.f32.gmra.mrb[0].mxu0 %v1247
  %v1845 = vpop.f32.mrb[0].mxu0
  %v1846 = vadd.f32 0.0, %v1845
  %v1847 = vpop.f32.mrb[0].mxu0
  %1848 = vmatprep.mubr.f32.mxu0 0.0
  %1849 = vmatmul.mubr.f32.gmra.mrb[0].mxu0 %v1248
  %v1850 = vpop.f32.mrb[0].mxu0
  %v1851 = vadd.f32 0.0, %v1850
  %v1852 = vpop.f32.mrb[0].mxu0
  %1853 = vmatprep.mubr.f32.mxu0 0.0
  %1854 = vmatmul.mubr.f32.gmra.mrb[0].mxu0 %v1249
  %v1855 = vpop.f32.mrb[0].mxu0
  %v1856 = vadd.f32 0.0, %v1855
  %v1857 = vpop.f32.mrb[0].mxu0
  %1858 = vmatprep.mubr.f32.mxu0 0.0
  %1859 = vmatmul.mubr.f32.gmra.mrb[0].mxu0 %v1250
  %v1860 = vpop.f32.mrb[0].mxu0
  %v1861 = vadd.f32 0.0, %v1860
  %v1862 = vpop.f32.mrb[0].mxu0
  %1863 = vmatprep.mubr.f32.mxu0 0.0
  %1864 = vmatmul.mubr.f32.gmra.mrb[0].mxu0 %v1251
  %v1865 = vpop.f32.mrb[0].mxu0
  %v1866 = vadd.f32 0.0, %v1865
  %v1867 = vpop.f32.mrb[0].mxu0
  %1868 = vmatprep.mubr.f32.mxu0 0.0
  %1869 = vmatmul.mubr.f32.gmra.mrb[0].mxu0 %v1252
  %v1870 = vpop.f32.mrb[0].mxu0
  %v1871 = vadd.f32 0.0, %v1870
  %v1872 = vpop.f32.mrb[0].mxu0
  %1873 = vmatprep.mubr.f32.mxu0 0.0
  %1874 = vmatmul.mubr.f32.gmra.mrb[0].mxu0 %v1253
  %v1875 = vpop.f32.mrb[0].mxu0
  %v1876 = vadd.f32 0.0, %v1875
  %v1877 = vpop.f32.mrb[0].mxu0
  %1878 = vmatprep.mubr.f32.mxu0 0.0
  %1879 = vmatmul.mubr.f32.gmra.mrb[0].mxu0 %v1254
  %v1880 = vpop.f32.mrb[0].mxu0
  %v1881 = vadd.f32 0.0, %v1880
  %v1882 = vpop.f32.mrb[0].mxu0
  %1883 = vmatprep.mubr.f32.mxu0 0.0
  %1884 = vmatmul.mubr.f32.gmra.mrb[0].mxu0 %v1255
  %v1885 = vpop.f32.mrb[0].mxu0
  %v1886 = vadd.f32 0.0, %v1885
  %v1887 = vpop.f32.mrb[0].mxu0
  %1888 = vmatprep.mubr.f32.mxu0 0.0
  %1889 = vmatmul.mubr.f32.gmra.mrb[0].mxu0 %v1256
  %v1890 = vpop.f32.mrb[0].mxu0
  %v1891 = vadd.f32 0.0, %v1890
  %v1892 = vpop.f32.mrb[0].mxu0
  %1893 = vmatprep.mubr.f32.mxu0 0.0
  %1894 = vmatmul.mubr.f32.gmra.mrb[0].mxu0 %v1257
  %v1895 = vpop.f32.mrb[0].mxu0
  %v1896 = vadd.f32 0.0, %v1895
  %v1897 = vpop.f32.mrb[0].mxu0
  %1898 = vmatprep.mubr.f32.mxu0 0.0
  %1899 = vmatmul.mubr.f32.gmra.mrb[0].mxu0 %v1258
  %v1900 = vpop.f32.mrb[0].mxu0
  %v1901 = vadd.f32 0.0, %v1900
  %v1902 = vpop.f32.mrb[0].mxu0
  %1903 = vmatprep.mubr.f32.mxu0 0.0
  %1904 = vmatmul.mubr.f32.gmra.mrb[0].mxu0 %v1259
  %v1905 = vpop.f32.mrb[0].mxu0
  %v1906 = vadd.f32 0.0, %v1905
  %v1907 = vpop.f32.mrb[0].mxu0
  %1908 = vmatprep.mubr.f32.mxu0 0.0
  %1909 = vmatmul.mubr.f32.gmra.mrb[0].mxu0 %v1260
  %v1910 = vpop.f32.mrb[0].mxu0
  %v1911 = vadd.f32 0.0, %v1910
  %v1912 = vpop.f32.mrb[0].mxu0
  %1913 = vmatprep.mubr.f32.mxu0 0.0
  %1914 = vmatmul.mubr.f32.gmra.mrb[0].mxu0 %v1261
  %v1915 = vpop.f32.mrb[0].mxu0
  %v1916 = vadd.f32 0.0, %v1915
  %v1917 = vpop.f32.mrb[0].mxu0
  %1918 = vmatprep.mubr.f32.mxu0 0.0
  %1919 = vmatmul.mubr.f32.gmra.mrb[0].mxu0 %v1262
  %v1920 = vpop.f32.mrb[0].mxu0
  %v1921 = vadd.f32 0.0, %v1920
  %v1922 = vpop.f32.mrb[0].mxu0
  %1923 = vmatprep.mubr.f32.mxu0 0.0
  %1924 = vmatmul.mubr.f32.gmra.mrb[0].mxu0 %v1263
  %v1925 = vpop.f32.mrb[0].mxu0
  %v1926 = vadd.f32 0.0, %v1925
  %v1927 = vpop.f32.mrb[0].mxu0
  %1928 = vmatprep.mubr.f32.mxu0 0.0
  %1929 = vmatmul.mubr.f32.gmra.mrb[0].mxu0 %v1264
  %v1930 = vpop.f32.mrb[0].mxu0
  %v1931 = vadd.f32 0.0, %v1930
  %v1932 = vpop.f32.mrb[0].mxu0
  %1933 = vmatprep.mubr.f32.mxu0 0.0
  %1934 = vmatmul.mubr.f32.gmra.mrb[0].mxu0 %v1265
  %v1935 = vpop.f32.mrb[0].mxu0
  %v1936 = vadd.f32 0.0, %v1935
  %v1937 = vpop.f32.mrb[0].mxu0
  %1938 = vmatprep.mubr.f32.mxu0 0.0
  %1939 = vmatmul.mubr.f32.gmra.mrb[0].mxu0 %v1266
  %v1940 = vpop.f32.mrb[0].mxu0
  %v1941 = vadd.f32 0.0, %v1940
  %v1942 = vpop.f32.mrb[0].mxu0
  %1943 = vmatprep.mubr.f32.mxu0 0.0
  %1944 = vmatmul.mubr.f32.gmra.mrb[0].mxu0 %v1267
  %v1945 = vpop.f32.mrb[0].mxu0
  %v1946 = vadd.f32 0.0, %v1945
  %v1947 = vpop.f32.mrb[0].mxu0
  %1948 = vmatprep.mubr.f32.mxu0 0.0
  %1949 = vmatmul.mubr.f32.gmra.mrb[0].mxu0 %v1268
  %v1950 = vpop.f32.mrb[0].mxu0
  %v1951 = vadd.f32 0.0, %v1950
  %v1952 = vpop.f32.mrb[0].mxu0
  %1953 = vmatprep.mubr.f32.mxu0 0.0
  %1954 = vmatmul.mubr.f32.gmra.mrb[0].mxu0 %v1269
  %v1955 = vpop.f32.mrb[0].mxu0
  %v1956 = vadd.f32 0.0, %v1955
  %v1957 = vpop.f32.mrb[0].mxu0
  %1958 = vmatprep.mubr.f32.mxu0 0.0
  %1959 = vmatmul.mubr.f32.gmra.mrb[0].mxu0 %v1270
  %v1960 = vpop.f32.mrb[0].mxu0
  %v1961 = vadd.f32 0.0, %v1960
  %v1962 = vpop.f32.mrb[0].mxu0
  %1963 = vmatprep.mubr.f32.mxu0 0.0
  %1964 = vmatmul.mubr.f32.gmra.mrb[0].mxu0 %v1271
  %v1965 = vpop.f32.mrb[0].mxu0
  %v1966 = vadd.f32 0.0, %v1965
  %v1967 = vpop.f32.mrb[0].mxu0
  %1968 = vmatprep.mubr.f32.mxu0 0.0
  %1969 = vmatmul.mubr.f32.gmra.mrb[0].mxu0 %v1272
  %v1970 = vpop.f32.mrb[0].mxu0
  %v1971 = vadd.f32 0.0, %v1970
  %v1972 = vpop.f32.mrb[0].mxu0
  %1973 = vmatprep.mubr.f32.mxu0 0.0
  %1974 = vmatmul.mubr.f32.gmra.mrb[0].mxu0 %v1273
  %v1975 = vpop.f32.mrb[0].mxu0
  %v1976 = vadd.f32 0.0, %v1975
  %v1977 = vpop.f32.mrb[0].mxu0
  %1978 = vmatprep.mubr.f32.mxu0 0.0
  %1979 = vmatmul.mubr.f32.gmra.mrb[0].mxu0 %v1274
  %v1980 = vpop.f32.mrb[0].mxu0
  %v1981 = vadd.f32 0.0, %v1980
  %v1982 = vpop.f32.mrb[0].mxu0
  %1983 = vmatprep.mubr.f32.mxu0 0.0
  %1984 = vmatmul.mubr.f32.gmra.mrb[0].mxu0 %v1275
  %v1985 = vpop.f32.mrb[0].mxu0
  %v1986 = vadd.f32 0.0, %v1985
  %v1987 = vpop.f32.mrb[0].mxu0
  %1988 = vmatprep.mubr.f32.mxu0 0.0
  %1989 = vmatmul.mubr.f32.gmra.mrb[0].mxu0 %v1276
  %v1990 = vpop.f32.mrb[0].mxu0
  %v1991 = vadd.f32 0.0, %v1990
  %v1992 = vpop.f32.mrb[0].mxu0
  %1993 = vmatprep.mubr.f32.mxu0 0.0
  %1994 = vmatmul.mubr.f32.gmra.mrb[0].mxu0 %v1277
  %v1995 = vpop.f32.mrb[0].mxu0
  %v1996 = vadd.f32 0.0, %v1995
  %v1997 = vpop.f32.mrb[0].mxu0
  %1998 = vdwg.mxu0
  %vm1999 = vcmask 7168
  %v2000 = vsel %vm1999, %v1361, 0.0
  %v2001 = vsel %vm1999, %v1366, 0.0
  %v2002 = vadd.f32 %v2000, %v2001
  %v2003 = vsel %vm1999, %v1371, 0.0
  %v2004 = vadd.f32 %v2002, %v2003
  %v2005 = vsel %vm1999, %v1376, 0.0
  %v2006 = vadd.f32 %v2004, %v2005
  %v2007 = vsel %vm1999, %v1381, 0.0
  %v2008 = vadd.f32 %v2006, %v2007
  %v2009 = vsel %vm1999, %v1386, 0.0
  %v2010 = vadd.f32 %v2008, %v2009
  %v2011 = vsel %vm1999, %v1391, 0.0
  %v2012 = vadd.f32 %v2010, %v2011
  %v2013 = vsel %vm1999, %v1396, 0.0
  %v2014 = vadd.f32 %v2012, %v2013
  %v2015 = vsel %vm1999, %v1401, 0.0
  %v2016 = vadd.f32 %v2014, %v2015
  %v2017 = vsel %vm1999, %v1406, 0.0
  %v2018 = vadd.f32 %v2016, %v2017
  %v2019 = vsel %vm1999, %v1411, 0.0
  %v2020 = vadd.f32 %v2018, %v2019
  %v2021 = vsel %vm1999, %v1416, 0.0
  %v2022 = vadd.f32 %v2020, %v2021
  %v2023 = vsel %vm1999, %v1421, 0.0
  %v2024 = vadd.f32 %v2022, %v2023
  %v2025 = vsel %vm1999, %v1426, 0.0
  %v2026 = vadd.f32 %v2024, %v2025
  %v2027 = vsel %vm1999, %v1431, 0.0
  %v2028 = vadd.f32 %v2026, %v2027
  %v2029 = vsel %vm1999, %v1436, 0.0
  %v2030 = vadd.f32 %v2028, %v2029
  %v2031 = vsel %vm1999, %v1441, 0.0
  %v2032 = vadd.f32 %v2030, %v2031
  %v2033 = vsel %vm1999, %v1446, 0.0
  %v2034 = vadd.f32 %v2032, %v2033
  %v2035 = vsel %vm1999, %v1451, 0.0
  %v2036 = vadd.f32 %v2034, %v2035
  %v2037 = vsel %vm1999, %v1456, 0.0
  %v2038 = vadd.f32 %v2036, %v2037
  %v2039 = vsel %vm1999, %v1461, 0.0
  %v2040 = vadd.f32 %v2038, %v2039
  %v2041 = vsel %vm1999, %v1466, 0.0
  %v2042 = vadd.f32 %v2040, %v2041
  %v2043 = vsel %vm1999, %v1471, 0.0
  %v2044 = vadd.f32 %v2042, %v2043
  %v2045 = vsel %vm1999, %v1476, 0.0
  %v2046 = vadd.f32 %v2044, %v2045
  %v2047 = vsel %vm1999, %v1481, 0.0
  %v2048 = vadd.f32 %v2046, %v2047
  %v2049 = vsel %vm1999, %v1486, 0.0
  %v2050 = vadd.f32 %v2048, %v2049
  %v2051 = vsel %vm1999, %v1491, 0.0
  %v2052 = vadd.f32 %v2050, %v2051
  %v2053 = vsel %vm1999, %v1496, 0.0
  %v2054 = vadd.f32 %v2052, %v2053
  %v2055 = vsel %vm1999, %v1501, 0.0
  %v2056 = vadd.f32 %v2054, %v2055
  %v2057 = vsel %vm1999, %v1506, 0.0
  %v2058 = vadd.f32 %v2056, %v2057
  %v2059 = vsel %vm1999, %v1511, 0.0
  %v2060 = vadd.f32 %v2058, %v2059
  %v2061 = vsel %vm1999, %v1516, 0.0
  %v2062 = vadd.f32 %v2060, %v2061
  %v2063 = vsel %vm1999, %v1521, 0.0
  %v2064 = vadd.f32 %v2062, %v2063
  %v2065 = vsel %vm1999, %v1526, 0.0
  %v2066 = vadd.f32 %v2064, %v2065
  %v2067 = vsel %vm1999, %v1531, 0.0
  %v2068 = vadd.f32 %v2066, %v2067
  %v2069 = vsel %vm1999, %v1536, 0.0
  %v2070 = vadd.f32 %v2068, %v2069
  %v2071 = vsel %vm1999, %v1541, 0.0
  %v2072 = vadd.f32 %v2070, %v2071
  %v2073 = vsel %vm1999, %v1546, 0.0
  %v2074 = vadd.f32 %v2072, %v2073
  %v2075 = vsel %vm1999, %v1551, 0.0
  %v2076 = vadd.f32 %v2074, %v2075
  %v2077 = vsel %vm1999, %v1556, 0.0
  %v2078 = vadd.f32 %v2076, %v2077
  %v2079 = vsel %vm1999, %v1561, 0.0
  %v2080 = vadd.f32 %v2078, %v2079
  %v2081 = vsel %vm1999, %v1566, 0.0
  %v2082 = vadd.f32 %v2080, %v2081
  %v2083 = vsel %vm1999, %v1571, 0.0
  %v2084 = vadd.f32 %v2082, %v2083
  %v2085 = vsel %vm1999, %v1576, 0.0
  %v2086 = vadd.f32 %v2084, %v2085
  %v2087 = vsel %vm1999, %v1581, 0.0
  %v2088 = vadd.f32 %v2086, %v2087
  %v2089 = vsel %vm1999, %v1586, 0.0
  %v2090 = vadd.f32 %v2088, %v2089
  %v2091 = vsel %vm1999, %v1591, 0.0
  %v2092 = vadd.f32 %v2090, %v2091
  %v2093 = vsel %vm1999, %v1596, 0.0
  %v2094 = vadd.f32 %v2092, %v2093
  %v2095 = vsel %vm1999, %v1601, 0.0
  %v2096 = vadd.f32 %v2094, %v2095
  %v2097 = vsel %vm1999, %v1606, 0.0
  %v2098 = vadd.f32 %v2096, %v2097
  %v2099 = vsel %vm1999, %v1611, 0.0
  %v2100 = vadd.f32 %v2098, %v2099
  %v2101 = vsel %vm1999, %v1616, 0.0
  %v2102 = vadd.f32 %v2100, %v2101
  %v2103 = vsel %vm1999, %v1621, 0.0
  %v2104 = vadd.f32 %v2102, %v2103
  %v2105 = vsel %vm1999, %v1626, 0.0
  %v2106 = vadd.f32 %v2104, %v2105
  %v2107 = vsel %vm1999, %v1631, 0.0
  %v2108 = vadd.f32 %v2106, %v2107
  %v2109 = vsel %vm1999, %v1636, 0.0
  %v2110 = vadd.f32 %v2108, %v2109
  %v2111 = vsel %vm1999, %v1641, 0.0
  %v2112 = vadd.f32 %v2110, %v2111
  %v2113 = vsel %vm1999, %v1646, 0.0
  %v2114 = vadd.f32 %v2112, %v2113
  %v2115 = vsel %vm1999, %v1651, 0.0
  %v2116 = vadd.f32 %v2114, %v2115
  %v2117 = vsel %vm1999, %v1656, 0.0
  %v2118 = vadd.f32 %v2116, %v2117
  %v2119 = vsel %vm1999, %v1661, 0.0
  %v2120 = vadd.f32 %v2118, %v2119
  %v2121 = vsel %vm1999, %v1666, 0.0
  %v2122 = vadd.f32 %v2120, %v2121
  %v2123 = vsel %vm1999, %v1671, 0.0
  %v2124 = vadd.f32 %v2122, %v2123
  %v2125 = vsel %vm1999, %v1676, 0.0
  %v2126 = vadd.f32 %v2124, %v2125
  %v2127 = vrot.slane %v2126, 4
  %v2128 = vadd.f32 %v2126, %v2127
  %v2129 = vrot.slane %v2128, 2
  %v2130 = vadd.f32 %v2128, %v2129
  %v2131 = vrot.slane %v2130, 1
  %v2132 = vadd.f32 %v2130, %v2131
  %v2133 = vsel %vm1999, %v1681, 0.0
  %v2134 = vsel %vm1999, %v1686, 0.0
  %v2135 = vadd.f32 %v2133, %v2134
  %v2136 = vsel %vm1999, %v1691, 0.0
  %v2137 = vadd.f32 %v2135, %v2136
  %v2138 = vsel %vm1999, %v1696, 0.0
  %v2139 = vadd.f32 %v2137, %v2138
  %v2140 = vsel %vm1999, %v1701, 0.0
  %v2141 = vadd.f32 %v2139, %v2140
  %v2142 = vsel %vm1999, %v1706, 0.0
  %v2143 = vadd.f32 %v2141, %v2142
  %v2144 = vsel %vm1999, %v1711, 0.0
  %v2145 = vadd.f32 %v2143, %v2144
  %v2146 = vsel %vm1999, %v1716, 0.0
  %v2147 = vadd.f32 %v2145, %v2146
  %v2148 = vsel %vm1999, %v1721, 0.0
  %v2149 = vadd.f32 %v2147, %v2148
  %v2150 = vsel %vm1999, %v1726, 0.0
  %v2151 = vadd.f32 %v2149, %v2150
  %v2152 = vsel %vm1999, %v1731, 0.0
  %v2153 = vadd.f32 %v2151, %v2152
  %v2154 = vsel %vm1999, %v1736, 0.0
  %v2155 = vadd.f32 %v2153, %v2154
  %v2156 = vsel %vm1999, %v1741, 0.0
  %v2157 = vadd.f32 %v2155, %v2156
  %v2158 = vsel %vm1999, %v1746, 0.0
  %v2159 = vadd.f32 %v2157, %v2158
  %v2160 = vsel %vm1999, %v1751, 0.0
  %v2161 = vadd.f32 %v2159, %v2160
  %v2162 = vsel %vm1999, %v1756, 0.0
  %v2163 = vadd.f32 %v2161, %v2162
  %v2164 = vsel %vm1999, %v1761, 0.0
  %v2165 = vadd.f32 %v2163, %v2164
  %v2166 = vsel %vm1999, %v1766, 0.0
  %v2167 = vadd.f32 %v2165, %v2166
  %v2168 = vsel %vm1999, %v1771, 0.0
  %v2169 = vadd.f32 %v2167, %v2168
  %v2170 = vsel %vm1999, %v1776, 0.0
  %v2171 = vadd.f32 %v2169, %v2170
  %v2172 = vsel %vm1999, %v1781, 0.0
  %v2173 = vadd.f32 %v2171, %v2172
  %v2174 = vsel %vm1999, %v1786, 0.0
  %v2175 = vadd.f32 %v2173, %v2174
  %v2176 = vsel %vm1999, %v1791, 0.0
  %v2177 = vadd.f32 %v2175, %v2176
  %v2178 = vsel %vm1999, %v1796, 0.0
  %v2179 = vadd.f32 %v2177, %v2178
  %v2180 = vsel %vm1999, %v1801, 0.0
  %v2181 = vadd.f32 %v2179, %v2180
  %v2182 = vsel %vm1999, %v1806, 0.0
  %v2183 = vadd.f32 %v2181, %v2182
  %v2184 = vsel %vm1999, %v1811, 0.0
  %v2185 = vadd.f32 %v2183, %v2184
  %v2186 = vsel %vm1999, %v1816, 0.0
  %v2187 = vadd.f32 %v2185, %v2186
  %v2188 = vsel %vm1999, %v1821, 0.0
  %v2189 = vadd.f32 %v2187, %v2188
  %v2190 = vsel %vm1999, %v1826, 0.0
  %v2191 = vadd.f32 %v2189, %v2190
  %v2192 = vsel %vm1999, %v1831, 0.0
  %v2193 = vadd.f32 %v2191, %v2192
  %v2194 = vsel %vm1999, %v1836, 0.0
  %v2195 = vadd.f32 %v2193, %v2194
  %v2196 = vsel %vm1999, %v1841, 0.0
  %v2197 = vadd.f32 %v2195, %v2196
  %v2198 = vsel %vm1999, %v1846, 0.0
  %v2199 = vadd.f32 %v2197, %v2198
  %v2200 = vsel %vm1999, %v1851, 0.0
  %v2201 = vadd.f32 %v2199, %v2200
  %v2202 = vsel %vm1999, %v1856, 0.0
  %v2203 = vadd.f32 %v2201, %v2202
  %v2204 = vsel %vm1999, %v1861, 0.0
  %v2205 = vadd.f32 %v2203, %v2204
  %v2206 = vsel %vm1999, %v1866, 0.0
  %v2207 = vadd.f32 %v2205, %v2206
  %v2208 = vsel %vm1999, %v1871, 0.0
  %v2209 = vadd.f32 %v2207, %v2208
  %v2210 = vsel %vm1999, %v1876, 0.0
  %v2211 = vadd.f32 %v2209, %v2210
  %v2212 = vsel %vm1999, %v1881, 0.0
  %v2213 = vadd.f32 %v2211, %v2212
  %v2214 = vsel %vm1999, %v1886, 0.0
  %v2215 = vadd.f32 %v2213, %v2214
  %v2216 = vsel %vm1999, %v1891, 0.0
  %v2217 = vadd.f32 %v2215, %v2216
  %v2218 = vsel %vm1999, %v1896, 0.0
  %v2219 = vadd.f32 %v2217, %v2218
  %v2220 = vsel %vm1999, %v1901, 0.0
  %v2221 = vadd.f32 %v2219, %v2220
  %v2222 = vsel %vm1999, %v1906, 0.0
  %v2223 = vadd.f32 %v2221, %v2222
  %v2224 = vsel %vm1999, %v1911, 0.0
  %v2225 = vadd.f32 %v2223, %v2224
  %v2226 = vsel %vm1999, %v1916, 0.0
  %v2227 = vadd.f32 %v2225, %v2226
  %v2228 = vsel %vm1999, %v1921, 0.0
  %v2229 = vadd.f32 %v2227, %v2228
  %v2230 = vsel %vm1999, %v1926, 0.0
  %v2231 = vadd.f32 %v2229, %v2230
  %v2232 = vsel %vm1999, %v1931, 0.0
  %v2233 = vadd.f32 %v2231, %v2232
  %v2234 = vsel %vm1999, %v1936, 0.0
  %v2235 = vadd.f32 %v2233, %v2234
  %v2236 = vsel %vm1999, %v1941, 0.0
  %v2237 = vadd.f32 %v2235, %v2236
  %v2238 = vsel %vm1999, %v1946, 0.0
  %v2239 = vadd.f32 %v2237, %v2238
  %v2240 = vsel %vm1999, %v1951, 0.0
  %v2241 = vadd.f32 %v2239, %v2240
  %v2242 = vsel %vm1999, %v1956, 0.0
  %v2243 = vadd.f32 %v2241, %v2242
  %v2244 = vsel %vm1999, %v1961, 0.0
  %v2245 = vadd.f32 %v2243, %v2244
  %v2246 = vsel %vm1999, %v1966, 0.0
  %v2247 = vadd.f32 %v2245, %v2246
  %v2248 = vsel %vm1999, %v1971, 0.0
  %v2249 = vadd.f32 %v2247, %v2248
  %v2250 = vsel %vm1999, %v1976, 0.0
  %v2251 = vadd.f32 %v2249, %v2250
  %v2252 = vsel %vm1999, %v1981, 0.0
  %v2253 = vadd.f32 %v2251, %v2252
  %v2254 = vsel %vm1999, %v1986, 0.0
  %v2255 = vadd.f32 %v2253, %v2254
  %v2256 = vsel %vm1999, %v1991, 0.0
  %v2257 = vadd.f32 %v2255, %v2256
  %v2258 = vsel %vm1999, %v1996, 0.0
  %v2259 = vadd.f32 %v2257, %v2258
  %v2260 = vrot.slane %v2259, 4
  %v2261 = vadd.f32 %v2259, %v2260
  %v2262 = vrot.slane %v2261, 2
  %v2263 = vadd.f32 %v2261, %v2262
  %v2264 = vrot.slane %v2263, 1
  %v2265 = vadd.f32 %v2263, %v2264
  %s2266 = sld [smem:[#allocation2]]
  %v2267 = vstv %s2266
  %v2268 = vadd.f32 %v2132, %v2267
  %v2269 = vadd.f32 %v2265, %v2267
  %vm2272 = vcmask 1041409
  %v2273 = vsel %vm2272, %v2269, %v2268
  %vm2275 = vcmask 1024
  %2276 = vst.msk [vmem:[%s5] sm:$0x3] %vm2275, %v2273
  // Predicated region
  $region22: #{octnet_forward.1} parent=0 // pred_check
    _
  $region23: #{octnet_forward.1} parent=0 // pred_check_branch
    %2278 = sbr.rel (0) target = $region25
  $region24: #{octnet_forward.1} parent=0 // pred_region
    _
  $region25: #{octnet_forward.1} parent=0 // pred_fallthru
    _
  // Predicated region
  $region26: #{octnet_forward.1} parent=0 // pred_check
    _
  $region27: #{octnet_forward.1} parent=0 // pred_check_branch
    %2280 = sbr.rel (0) target = $region29
  $region28: #{octnet_forward.1} parent=0 // pred_region
    _
  $region29: #{octnet_forward.1} parent=0 // pred_fallthru
    _

</llo_original>
